<compile_context>
chip_gen: v7x
topology: tpu7x:2x2x1
jax: 0.10.0
libtpu: 0.0.40
codegen_flags: <defaults>
</compile_context>

<pallas_src>
import functools

import jax
import jax.numpy as jnp
import numpy as np
from jax.experimental import pallas as pl
from jax.experimental.pallas import tpu as pltpu


def _round_up(x, m):
    return ((x + m - 1) // m) * m


@functools.lru_cache(maxsize=None)
def _vmem_limit_bytes():
    """Conservative scoped-VMEM limit that is safe on v5e/v6e (128 MiB) and v7x (64 MiB)."""
    vmem = 64 * 1024 * 1024
    try:
        info = pltpu.get_tpu_info()
        vmem = int(getattr(info, "vmem_capacity_bytes", vmem))
    except Exception:
        pass
    return int(min(vmem // 2, 48 * 1024 * 1024))


# ----------------------------------------------------------------------------
# Pallas kernel 1a: single-K-tile GEMM + bias + activation (no accumulator)
# ----------------------------------------------------------------------------
def _gemm_bias_act_fast_kernel(a_ref, b_ref, bias_ref, o_ref, *, activation):
    acc = jnp.dot(a_ref[...], b_ref[...], preferred_element_type=jnp.float32)
    acc = acc + bias_ref[...]
    if activation == "relu":
        acc = jnp.maximum(acc, 0.0)
    elif activation == "tanh":
        acc = jnp.tanh(acc)
    o_ref[...] = acc.astype(o_ref.dtype)


# ----------------------------------------------------------------------------
# Pallas kernel 1b: tiled GEMM with K grid axis + VMEM f32 accumulator
# (only used when K does not fit a single tile)
# ----------------------------------------------------------------------------
def _gemm_bias_act_acc_kernel(a_ref, b_ref, bias_ref, o_ref, acc_ref, *, activation):
    @pl.when(pl.program_id(2) == 0)
    def _init():
        acc_ref[...] = jnp.zeros_like(acc_ref)

    acc_ref[...] += jnp.dot(a_ref[...], b_ref[...],
                            preferred_element_type=jnp.float32)

    @pl.when(pl.program_id(2) == pl.num_programs(2) - 1)
    def _finalize():
        acc = acc_ref[...] + bias_ref[...]
        if activation == "relu":
            acc = jnp.maximum(acc, 0.0)
        elif activation == "tanh":
            acc = jnp.tanh(acc)
        o_ref[...] = acc.astype(o_ref.dtype)


def pallas_linear(a, w, b, activation="none",
                  compute_dtype=jnp.bfloat16, out_dtype=jnp.float32,
                  tm_max=128, tk_max=512, tn_max=128):
    """a: (M, K), w: (K, N), b: (N,)  ->  (M, N) in out_dtype.

    N is padded to a 128 multiple (lane-dense unmasked stores).  K is padded
    only to the dtype sublane multiple when it fits a single tile; M only to 8.
    """
    M, K = a.shape
    K2, N = w.shape
    assert K == K2

    sub = 16 if jnp.dtype(compute_dtype).itemsize == 2 else 8

    Mp = _round_up(M, 8)
    tm = Mp if Mp <= tm_max else tm_max
    Mp = _round_up(Mp, tm)

    Np = _round_up(N, 128)
    tn = Np if Np <= tn_max else tn_max
    Np = _round_up(Np, tn)

    Kp = _round_up(K, sub)
    single_k = Kp <= tk_max
    if not single_k:
        Kp = _round_up(K, 128)
        tk = tk_max
        Kp = _round_up(Kp, tk)
    else:
        tk = Kp

    a_p = a.astype(compute_dtype)
    if (Mp, Kp) != (M, K):
        a_p = jnp.pad(a_p, ((0, Mp - M), (0, Kp - K)))
    w_p = w.astype(compute_dtype)
    if (Kp, Np) != (K, N):
        w_p = jnp.pad(w_p, ((0, Kp - K), (0, Np - N)))
    b_p = b.astype(jnp.float32)
    if Np != N:
        b_p = jnp.pad(b_p, (0, Np - N))
    b_p = b_p.reshape(1, Np)

    vmem_limit = _vmem_limit_bytes()

    if single_k:
        kernel = functools.partial(_gemm_bias_act_fast_kernel, activation=activation)
        out = pl.pallas_call(
            kernel,
            out_shape=jax.ShapeDtypeStruct((Mp, Np), out_dtype),
            grid=(Mp // tm, Np // tn),
            in_specs=[
                pl.BlockSpec((tm, Kp), lambda i, j: (i, 0)),
                pl.BlockSpec((Kp, tn), lambda i, j: (0, j)),
                pl.BlockSpec((1, tn), lambda i, j: (0, j)),
            ],
            out_specs=pl.BlockSpec((tm, tn), lambda i, j: (i, j)),
            compiler_params=pltpu.CompilerParams(
                dimension_semantics=("parallel", "parallel"),
                vmem_limit_bytes=vmem_limit,
            ),
        )(a_p, w_p, b_p)
    else:
        kernel = functools.partial(_gemm_bias_act_acc_kernel, activation=activation)
        out = pl.pallas_call(
            kernel,
            out_shape=jax.ShapeDtypeStruct((Mp, Np), out_dtype),
            grid=(Mp // tm, Np // tn, Kp // tk),
            in_specs=[
                pl.BlockSpec((tm, tk), lambda i, j, k: (i, k)),
                pl.BlockSpec((tk, tn), lambda i, j, k: (k, j)),
                pl.BlockSpec((1, tn), lambda i, j, k: (0, j)),
            ],
            out_specs=pl.BlockSpec((tm, tn), lambda i, j, k: (i, j)),
            scratch_shapes=[pltpu.VMEM((tm, tn), jnp.float32)],
            compiler_params=pltpu.CompilerParams(
                dimension_semantics=("parallel", "parallel", "arbitrary"),
                vmem_limit_bytes=vmem_limit,
            ),
        )(a_p, w_p, b_p)

    if Mp == M and Np == N:
        return out
    return out[:M, :N]


# ----------------------------------------------------------------------------
# Pallas kernel 2: fused voxel head  (3x3-conv GEMM + relu -> 1x1 predictor)
# ----------------------------------------------------------------------------
def _voxel_head_kernel(cols_ref, w1_ref, b1_ref, w2_ref, b2_ref, out_ref):
    h = jnp.dot(cols_ref[...], w1_ref[...], preferred_element_type=jnp.float32)
    h = jnp.maximum(h + b1_ref[...], 0.0)
    s = jnp.dot(h.astype(w2_ref.dtype), w2_ref[...],
                preferred_element_type=jnp.float32) + b2_ref[...]
    out_ref[...] = s


# ----------------------------------------------------------------------------
# Pallas kernel 3: fused mesh-refinement stage
#   bottleneck(relu) -> graphconv1(relu) -> graphconv2(relu) -> offset(tanh)
# GraphConv inputs are cat(h, coords); implemented with split (feature / coord)
# weights so nothing is concatenated in-kernel.  All operands bf16, f32 accum.
# ----------------------------------------------------------------------------
def _mesh_refine_kernel(feats_ref, coords_ref, adj_ref, deg_ref,
                        bw_ref, bb_ref,
                        g1w0f_ref, g1w0c_ref, g1b0_ref, g1w1f_ref, g1w1c_ref, g1b1_ref,
                        g2w0f_ref, g2w0c_ref, g2b0_ref, g2w1f_ref, g2w1c_ref, g2b1_ref,
                        owf_ref, owc_ref, ob_ref,
                        out_ref):
    f32 = jnp.float32
    bf16 = jnp.bfloat16

    v = coords_ref[...]                       # (Mp, CP)  bf16, coords in lanes 0..2
    adj = adj_ref[...]                        # (Mp, Mp)  bf16 block-diag 0/1
    deg = deg_ref[...]                        # (Mp, 1)   f32
    # neighbour-sum of coordinates is constant across graph convs: hoist it.
    nbr_v = jnp.dot(adj, v, preferred_element_type=f32).astype(bf16)

    # bottleneck on vert-aligned image features only, then relu
    h = jnp.dot(feats_ref[...], bw_ref[...], preferred_element_type=f32) + bb_ref[...]
    h = jnp.maximum(h, 0.0)

    def gconv(h_f32, w0f, w0c, b0, w1f, w1c, b1):
        # pytorch3d GraphConv on x = cat(h, v):
        #   w0(x) + neighbour_sum(w1(x))
        # = h@W0f + v@W0c + b0 + (adj@h)@W1f + (adj@v)@W1c + deg*b1
        hb = h_f32.astype(bf16)
        nbr_h = jnp.dot(adj, hb, preferred_element_type=f32).astype(bf16)
        y = (jnp.dot(hb, w0f[...], preferred_element_type=f32)
             + jnp.dot(v, w0c[...], preferred_element_type=f32)
             + b0[...]
             + jnp.dot(nbr_h, w1f[...], preferred_element_type=f32)
             + jnp.dot(nbr_v, w1c[...], preferred_element_type=f32)
             + deg * b1[...])
        return jnp.maximum(y, 0.0)

    h = gconv(h, g1w0f_ref, g1w0c_ref, g1b0_ref, g1w1f_ref, g1w1c_ref, g1b1_ref)
    h = gconv(h, g2w0f_ref, g2w0c_ref, g2b0_ref, g2w1f_ref, g2w1c_ref, g2b1_ref)

    # vertex offsets from cat(h, coords), tanh
    off = jnp.tanh(jnp.dot(h.astype(bf16), owf_ref[...], preferred_element_type=f32)
                   + jnp.dot(v, owc_ref[...], preferred_element_type=f32)
                   + ob_ref[...])
    out_ref[...] = off


# ----------------------------------------------------------------------------
# Conv2d = im2col (glue, already in compute dtype) + Pallas GEMM
# ----------------------------------------------------------------------------
def conv2d(x_nchw, w, b, stride=1, padding=1, activation="relu",
           compute_dtype=jnp.bfloat16, out_dtype=jnp.bfloat16):
    """x: (N, Cin, H, W); w: (Cout, Cin, kh, kw) (PyTorch layout); b: (Cout,)."""
    # TODO(synk): folding the kh*kw tap loop into the Pallas kernel (K grid axis
    # whose index_map walks the taps) would remove the kh*kw HBM blow-up of
    # im2col at realistic image sizes.
    # TODO(synk): for tiny Cout (bb1: 8) a transposed GEMM orientation (Cout on
    # the sublane axis) would avoid padding Cout 8->128 output lanes.
    N, C, H, W = x_nchw.shape
    Cout, Cin, kh, kw = w.shape
    assert Cin == C
    xp = jnp.pad(x_nchw.astype(compute_dtype),
                 ((0, 0), (0, 0), (padding, padding), (padding, padding)))
    Ho = (H + 2 * padding - kh) // stride + 1
    Wo = (W + 2 * padding - kw) // stride + 1
    cols = jnp.stack(
        [xp[:, :, i:i + stride * Ho:stride, j:j + stride * Wo:stride]
         for i in range(kh) for j in range(kw)],
        axis=2,
    )
    cols = cols.transpose(0, 3, 4, 1, 2).reshape(N * Ho * Wo, C * kh * kw)
    w_mat = w.reshape(Cout, C * kh * kw).T  # (K, Cout)
    out = pallas_linear(cols, w_mat, b, activation=activation,
                        compute_dtype=compute_dtype, out_dtype=out_dtype)
    return out.reshape(N, Ho, Wo, Cout).transpose(0, 3, 1, 2)


# ----------------------------------------------------------------------------
# Deterministic parameter construction
# ----------------------------------------------------------------------------
def _init_conv(key, cout, cin, k):
    k1, k2 = jax.random.split(key)
    fan_in = cin * k * k
    w = jax.random.normal(k1, (cout, cin, k, k), jnp.float32) / np.sqrt(fan_in)
    b = 0.01 * jax.random.normal(k2, (cout,), jnp.float32)
    return {"w": w, "b": b}


def _init_linear(key, cin, cout):
    k1, k2 = jax.random.split(key)
    w = jax.random.normal(k1, (cin, cout), jnp.float32) / np.sqrt(cin)
    b = 0.01 * jax.random.normal(k2, (cout,), jnp.float32)
    return {"w": w, "b": b}


def init_params(key, in_channels=3, voxel_size=8, hidden=32):
    keys = jax.random.split(key, 12)
    feat_dims = [8, 16, 32]
    gin = hidden + 3  # GraphConv / offset inputs are cat(features, coords)
    params = {
        # backbone: 3 stride-2 convs
        "bb1": _init_conv(keys[0], feat_dims[0], in_channels, 3),
        "bb2": _init_conv(keys[1], feat_dims[1], feat_dims[0], 3),
        "bb3": _init_conv(keys[2], feat_dims[2], feat_dims[1], 3),
        # voxel head: conv + 1x1 predictor (+ nearest upsample) -> (N, V, V, V)
        "vh_conv": _init_conv(keys[3], feat_dims[2], feat_dims[2], 3),
        "vh_pred": _init_conv(keys[4], voxel_size, feat_dims[2], 1),
        # mesh refinement stage (MeshRefinementStage layout):
        #   bottleneck on vert_align feats, coords appended to each gconv/offset
        "bottleneck": _init_linear(keys[5], sum(feat_dims), hidden),
        "gc1_w0": _init_linear(keys[6], gin, hidden),
        "gc1_w1": _init_linear(keys[7], gin, hidden),
        "gc2_w0": _init_linear(keys[8], gin, hidden),
        "gc2_w1": _init_linear(keys[9], gin, hidden),
        "offset": _init_linear(keys[10], gin, 3),
    }
    return params, feat_dims


# ----------------------------------------------------------------------------
# Geometry helpers (plain JAX glue)
# ----------------------------------------------------------------------------
def get_blender_intrinsic_matrix():
    return jnp.array(
        [[2.1875, 0.0, 0.0, 0.0],
         [0.0, 2.1875, 0.0, 0.0],
         [0.0, 0.0, -1.002002, -0.2002002],
         [0.0, 0.0, -1.0, 0.0]],
        dtype=jnp.float32,
    )


def cube_mesh(batch):
    """Fixed-topology unit-cube mesh per batch element (dummy_mesh / cubify stand-in)."""
    verts = np.array(
        [[-1, -1, -1], [1, -1, -1], [1, 1, -1], [-1, 1, -1],
         [-1, -1, 1], [1, -1, 1], [1, 1, 1], [-1, 1, 1]], dtype=np.float32)
    verts = verts * 0.3 + np.array([0.0, 0.0, -2.0], dtype=np.float32)
    faces = np.array(
        [[0, 1, 2], [0, 2, 3], [4, 6, 5], [4, 7, 6],
         [0, 4, 5], [0, 5, 1], [1, 5, 6], [1, 6, 2],
         [2, 6, 7], [2, 7, 3], [3, 7, 4], [3, 4, 0]], dtype=np.int32)
    adj = np.zeros((8, 8), dtype=np.float32)
    for f in faces:
        for a, b in ((0, 1), (1, 2), (2, 0)):
            adj[f[a], f[b]] = 1.0
            adj[f[b], f[a]] = 1.0
    verts_b = jnp.broadcast_to(jnp.asarray(verts)[None], (batch, 8, 3))
    return verts_b, jnp.asarray(faces), jnp.asarray(adj)


def project_verts_ndc(verts, P, eps=1e-4):
    """verts: (N, V, 3), P: (N, 4, 4) -> NDC xy (N, V, 2). Signed-eps clamp of w."""
    ones = jnp.ones(verts.shape[:2] + (1,), verts.dtype)
    hom = jnp.concatenate([verts, ones], axis=-1)
    proj = jnp.einsum("nij,nvj->nvi", P, hom)
    w = proj[..., 3:4]
    w_sign = jnp.where(w >= 0, 1.0, -1.0)
    w_safe = w_sign * jnp.maximum(jnp.abs(w), eps)
    return proj[..., :2] / w_safe


def vert_align(feats_list, ndc):
    """Bilinear sample (align_corners=True, zero padding OOB) of each feature map.

    # TODO(synk): data-dependent gather (grid_sample) has no clean Pallas
    # equivalent on TPU; done in plain JAX.
    """
    outs = []
    for f in feats_list:
        N, C, H, W = f.shape
        x = (ndc[..., 0] + 1.0) * 0.5 * (W - 1)
        y = (ndc[..., 1] + 1.0) * 0.5 * (H - 1)
        x0 = jnp.floor(x)
        y0 = jnp.floor(y)
        x1 = x0 + 1
        y1 = y0 + 1
        wx = (x - x0)[..., None]
        wy = (y - y0)[..., None]
        f_nhwc = f.transpose(0, 2, 3, 1)

        def sample(yi, xi):
            valid = ((xi >= 0) & (xi <= W - 1) & (yi >= 0) & (yi <= H - 1))
            yc = jnp.clip(yi, 0, H - 1).astype(jnp.int32)
            xc = jnp.clip(xi, 0, W - 1).astype(jnp.int32)
            v = jax.vmap(lambda fm, yy, xx: fm[yy, xx])(f_nhwc, yc, xc)
            return v * valid[..., None].astype(f.dtype)

        v00 = sample(y0, x0)
        v01 = sample(y0, x1)
        v10 = sample(y1, x0)
        v11 = sample(y1, x1)
        out = (v00 * (1 - wx) * (1 - wy) + v01 * wx * (1 - wy)
               + v10 * (1 - wx) * wy + v11 * wx * wy)
        outs.append(out)
    return jnp.concatenate(outs, axis=-1)


# ----------------------------------------------------------------------------
# Sub-modules
# ----------------------------------------------------------------------------
def backbone(params, imgs):
    # Intermediate features are produced and stored as bf16 straight from the
    # GEMM kernels; the next layer / vert_align consume bf16 directly.
    f1 = conv2d(imgs, params["bb1"]["w"], params["bb1"]["b"], stride=2, padding=1)
    f2 = conv2d(f1, params["bb2"]["w"], params["bb2"]["b"], stride=2, padding=1)
    f3 = conv2d(f2, params["bb3"]["w"], params["bb3"]["b"], stride=2, padding=1)
    return [f1, f2, f3]


def voxel_head(params, feat, voxel_size=8):
    """Fused Pallas launch: 3x3 conv + relu + 1x1 predictor; nearest upsample after."""
    N, C, H, W = feat.shape
    w1 = params["vh_conv"]["w"]
    b1 = params["vh_conv"]["b"]
    w2 = params["vh_pred"]["w"]
    b2 = params["vh_pred"]["b"]
    Cout1 = w1.shape[0]
    kh, kw = 3, 3
    bf16 = jnp.bfloat16

    xp = jnp.pad(feat.astype(bf16), ((0, 0), (0, 0), (1, 1), (1, 1)))
    Ho, Wo = H, W
    cols = jnp.stack(
        [xp[:, :, i:i + Ho, j:j + Wo] for i in range(kh) for j in range(kw)], axis=2)
    cols = cols.transpose(0, 3, 4, 1, 2).reshape(N * Ho * Wo, C * kh * kw)

    M, K = cols.shape
    Mp = _round_up(M, 8)
    Kp = _round_up(K, 16)
    OUTP = 128  # lane-dense padded width for the (.., voxel_size) scores

    cols_p = jnp.pad(cols, ((0, Mp - M), (0, Kp - K)))
    w1_mat = jnp.pad(w1.reshape(Cout1, K).T.astype(bf16), ((0, Kp - K), (0, 0)))
    b1_row = b1.astype(jnp.float32).reshape(1, Cout1)
    w2_mat = jnp.pad(w2.reshape(voxel_size, Cout1).T.astype(bf16),
                     ((0, 0), (0, OUTP - voxel_size)))
    b2_row = jnp.pad(b2.astype(jnp.float32), (0, OUTP - voxel_size)).reshape(1, OUTP)

    args = [cols_p, w1_mat, b1_row, w2_mat, b2_row]
    scores = pl.pallas_call(
        _voxel_head_kernel,
        out_shape=jax.ShapeDtypeStruct((Mp, OUTP), jnp.float32),
        grid=(1,),
        in_specs=[pl.BlockSpec(x.shape, lambda i: (0, 0)) for x in args],
        out_specs=pl.BlockSpec((Mp, OUTP), lambda i: (0, 0)),
        compiler_params=pltpu.CompilerParams(
            dimension_semantics=("arbitrary",),
            vmem_limit_bytes=_vmem_limit_bytes(),
        ),
    )(*args)

    scores = scores[:M, :voxel_size].reshape(N, Ho, Wo, voxel_size).transpose(0, 3, 1, 2)
    # 1x1 conv commutes with nearest upsample: predicted at low res, repeat now.
    assert voxel_size % Ho == 0 and voxel_size // Ho >= 1, \
        "feature map must evenly divide the voxel grid"
    factor = voxel_size // Ho
    if factor > 1:
        scores = jnp.repeat(jnp.repeat(scores, factor, axis=2), factor, axis=3)
    return scores  # (N, D=voxel_size, H, W) voxel occupancy logits


def mesh_refinement_head(params, img_feats, verts, adj, P):
    """Single fused Pallas launch for one MeshRefinementStage (2 graph convs)."""
    # TODO(synk): the real head runs multiple stages; this is one stage (it would
    # repeat this fused kernel with per-stage weights and re-projected verts).
    # TODO(synk): at realistic cubify vertex counts the dense block-diagonal
    # adjacency ((B*V)^2) will not fit v7x's 64 MiB VMEM; switch to a tiled
    # adj@h matmul or a scalar-prefetched sparse edge-list neighbour sum, and
    # split the M rows over a parallel grid axis to use both v7x TensorCores.
    Nb, V, _ = verts.shape
    hidden = params["bottleneck"]["w"].shape[1]
    bf16 = jnp.bfloat16

    ndc = project_verts_ndc(verts, P)
    vert_img_feats = vert_align(img_feats, ndc)          # (Nb, V, sum(feat_dims))

    M = Nb * V
    C0 = vert_img_feats.shape[-1]
    Mp = _round_up(M, 8)
    C0p = _round_up(C0, 16)
    CP = 8       # padded coord width (coords in lanes 0..2)
    OUTP = 128   # lane-dense padded width for the (.., 3) offsets

    feats_p = jnp.pad(vert_img_feats.reshape(M, C0).astype(bf16),
                      ((0, Mp - M), (0, C0p - C0)))
    coords_p = jnp.pad(verts.reshape(M, 3).astype(bf16),
                       ((0, Mp - M), (0, CP - 3)))

    # block-diagonal adjacency over the batch + per-vertex degree (for w1 bias)
    adj_blk = jnp.kron(jnp.eye(Nb, dtype=jnp.float32), adj.astype(jnp.float32))
    adj_f32 = jnp.pad(adj_blk, ((0, Mp - M), (0, Mp - M)))
    deg = jnp.sum(adj_f32, axis=1, keepdims=True)        # (Mp, 1) f32
    adj_p = adj_f32.astype(bf16)                         # 0/1 exact in bf16

    def split_w(w):   # (hidden+3, out) -> feature part (hidden,out), coord part (CP,out)
        wf = w[:hidden].astype(bf16)
        wc = jnp.pad(w[hidden:].astype(bf16), ((0, CP - 3), (0, 0)))
        return wf, wc

    def row(b, npad=None):
        b = b.astype(jnp.float32)
        if npad is not None and npad != b.shape[0]:
            b = jnp.pad(b, (0, npad - b.shape[0]))
        return b.reshape(1, -1)

    bw = jnp.pad(params["bottleneck"]["w"].astype(bf16), ((0, C0p - C0), (0, 0)))
    bb = row(params["bottleneck"]["b"])

    g1w0f, g1w0c = split_w(params["gc1_w0"]["w"]); g1b0 = row(params["gc1_w0"]["b"])
    g1w1f, g1w1c = split_w(params["gc1_w1"]["w"]); g1b1 = row(params["gc1_w1"]["b"])
    g2w0f, g2w0c = split_w(params["gc2_w0"]["w"]); g2b0 = row(params["gc2_w0"]["b"])
    g2w1f, g2w1c = split_w(params["gc2_w1"]["w"]); g2b1 = row(params["gc2_w1"]["b"])
    owf, owc = split_w(params["offset"]["w"])
    owf = jnp.pad(owf, ((0, 0), (0, OUTP - 3)))
    owc = jnp.pad(owc, ((0, 0), (0, OUTP - 3)))
    ob = row(params["offset"]["b"], OUTP)

    args = [feats_p, coords_p, adj_p, deg,
            bw, bb,
            g1w0f, g1w0c, g1b0, g1w1f, g1w1c, g1b1,
            g2w0f, g2w0c, g2b0, g2w1f, g2w1c, g2b1,
            owf, owc, ob]

    off_p = pl.pallas_call(
        _mesh_refine_kernel,
        out_shape=jax.ShapeDtypeStruct((Mp, OUTP), jnp.float32),
        grid=(1,),
        in_specs=[pl.BlockSpec(x.shape, lambda i: (0, 0)) for x in args],
        out_specs=pl.BlockSpec((Mp, OUTP), lambda i: (0, 0)),
        compiler_params=pltpu.CompilerParams(
            dimension_semantics=("arbitrary",),
            vmem_limit_bytes=_vmem_limit_bytes(),
        ),
    )(*args)

    offsets = off_p[:M, :3].reshape(Nb, V, 3)
    return verts + offsets


# ----------------------------------------------------------------------------
# VoxMeshHead forward
# ----------------------------------------------------------------------------
def vox_mesh_head_forward(params, imgs, voxel_size=8, voxel_only=False):
    N = imgs.shape[0]
    K = get_blender_intrinsic_matrix()
    P = jnp.broadcast_to(K[None], (N, 4, 4))

    img_feats = backbone(params, imgs)
    voxel_scores = [voxel_head(params, img_feats[-1], voxel_size=voxel_size)]

    # TODO(synk): cubify (data-dependent marching-cube-style topology extraction
    # from voxel_scores) has no clean Pallas/TPU equivalent; a fixed cube mesh
    # (same as the module's dummy_mesh path) is used as the initial mesh.
    init_verts, faces, adj = cube_mesh(N)

    refined_verts = mesh_refinement_head(params, img_feats, init_verts, adj, P)

    return {
        "voxel_scores": voxel_scores,
        "meshes_pred": [refined_verts],
        "init_meshes": (init_verts, faces),
    }


# ----------------------------------------------------------------------------
if __name__ == "__main__":
    key = jax.random.PRNGKey(0)
    k_param, k_img = jax.random.split(key)

    in_channels, H, W = 3, 16, 16
    batch = 2
    voxel_size = 8

    params, feat_dims = init_params(k_param, in_channels=in_channels,
                                    voxel_size=voxel_size, hidden=32)
    imgs = jax.random.normal(k_img, (batch, in_channels, H, W), jnp.float32)

    fwd = jax.jit(functools.partial(vox_mesh_head_forward, voxel_size=voxel_size))
    out = fwd(params, imgs)

    jax.block_until_ready(out["voxel_scores"][0])
    jax.block_until_ready(out["meshes_pred"][0])

    assert out["voxel_scores"][0].shape == (batch, voxel_size, voxel_size, voxel_size)
    assert out["meshes_pred"][0].shape == (batch, 8, 3)
    print("KERNEL_OK")
</pallas_src>

<mosaic_0001>
module attributes {stable_mosaic.version = 11 : i64} {
  func.func @_gemm_bias_act_fast_kernel(%arg0: i32, %arg1: i32, %arg2: memref<128x32xbf16, #tpu.memory_space<vmem>>, %arg3: memref<32x128xbf16, #tpu.memory_space<vmem>>, %arg4: memref<1x128xf32, #tpu.memory_space<vmem>>, %arg5: memref<128x128xbf16, #tpu.memory_space<vmem>>) attributes {dimension_semantics = [#tpu.dimension_semantics<parallel>, #tpu.dimension_semantics<parallel>], iteration_bounds = array<i64: 1, 1>, scalar_prefetch = 0 : i64, scratch_operands = 0 : i64, tpu.core_type = #tpu.core_type<tc>, window_params = [{transform_indices = @transform_0, window_bounds = array<i64: 128, 32>}, {transform_indices = @transform_1, window_bounds = array<i64: 32, 128>}, {transform_indices = @transform_2, window_bounds = array<i64: 1, 128>}, {transform_indices = @transform_3, window_bounds = array<i64: 128, 128>}]} {
    %c0 = arith.constant 0 : index
    %c0_0 = arith.constant 0 : index
    %0 = vector.load %arg2[%c0, %c0_0] : memref<128x32xbf16, #tpu.memory_space<vmem>>, vector<128x32xbf16>
    %c0_1 = arith.constant 0 : index
    %c0_2 = arith.constant 0 : index
    %1 = vector.load %arg3[%c0_1, %c0_2] : memref<32x128xbf16, #tpu.memory_space<vmem>>, vector<32x128xbf16>
    %cst = arith.constant dense<0.000000e+00> : vector<128x128xf32>
    %2 = tpu.matmul %0, %1, %cst {dimension_numbers = #tpu.dot_dimension_numbers<[1], [0], [0], [1], [0, 0, 1, 1], [], []>} : vector<128x32xbf16>, vector<32x128xbf16>, vector<128x128xf32> -> vector<128x128xf32>
    %c0_3 = arith.constant 0 : index
    %c0_4 = arith.constant 0 : index
    %3 = vector.load %arg4[%c0_3, %c0_4] : memref<1x128xf32, #tpu.memory_space<vmem>>, vector<1x128xf32>
    %4 = vector.broadcast %3 : vector<1x128xf32> to vector<128x128xf32>
    %5 = arith.addf %2, %4 : vector<128x128xf32>
    %cst_5 = arith.constant 0.000000e+00 : f32
    %6 = vector.broadcast %cst_5 : f32 to vector<128x128xf32>
    %7 = arith.maximumf %5, %6 : vector<128x128xf32>
    %8 = arith.truncf %7 : vector<128x128xf32> to vector<128x128xbf16>
    %c0_6 = arith.constant 0 : index
    %c0_7 = arith.constant 0 : index
    %9 = vector.load %arg5[%c0_6, %c0_7] : memref<128x128xbf16, #tpu.memory_space<vmem>>, vector<128x128xbf16>
    tpu.vector_store %arg5[%c0_6, %c0_7], %8 {strides = array<i32>} : memref<128x128xbf16, #tpu.memory_space<vmem>>, vector<128x128xbf16>,
    return
  }
  func.func @transform_0(%arg0: i32, %arg1: i32) -> (i32, i32) {
    %c0_i32 = arith.constant 0 : i32
    %c0_i32_0 = arith.constant 0 : i32
    return %arg0, %c0_i32 : i32, i32
  }
  func.func @transform_1(%arg0: i32, %arg1: i32) -> (i32, i32) {
    %c0_i32 = arith.constant 0 : i32
    %c0_i32_0 = arith.constant 0 : i32
    return %c0_i32, %arg1 : i32, i32
  }
  func.func @transform_2(%arg0: i32, %arg1: i32) -> (i32, i32) {
    %c0_i32 = arith.constant 0 : i32
    %c0_i32_0 = arith.constant 0 : i32
    return %c0_i32, %arg1 : i32, i32
  }
  func.func @transform_3(%arg0: i32, %arg1: i32) -> (i32, i32) {
    %c0_i32 = arith.constant 0 : i32
    return %arg0, %arg1 : i32, i32
  }
}

module attributes {stable_mosaic.version = 11 : i64} {
  func.func @_gemm_bias_act_fast_kernel(%arg0: i32, %arg1: i32, %arg2: memref<32x80xbf16, #tpu.memory_space<vmem>>, %arg3: memref<80x128xbf16, #tpu.memory_space<vmem>>, %arg4: memref<1x128xf32, #tpu.memory_space<vmem>>, %arg5: memref<32x128xbf16, #tpu.memory_space<vmem>>) attributes {dimension_semantics = [#tpu.dimension_semantics<parallel>, #tpu.dimension_semantics<parallel>], iteration_bounds = array<i64: 1, 1>, scalar_prefetch = 0 : i64, scratch_operands = 0 : i64, tpu.core_type = #tpu.core_type<tc>, window_params = [{transform_indices = @transform_0, window_bounds = array<i64: 32, 80>}, {transform_indices = @transform_1, window_bounds = array<i64: 80, 128>}, {transform_indices = @transform_2, window_bounds = array<i64: 1, 128>}, {transform_indices = @transform_3, window_bounds = array<i64: 32, 128>}]} {
    %c0 = arith.constant 0 : index
    %c0_0 = arith.constant 0 : index
    %0 = vector.load %arg2[%c0, %c0_0] : memref<32x80xbf16, #tpu.memory_space<vmem>>, vector<32x80xbf16>
    %c0_1 = arith.constant 0 : index
    %c0_2 = arith.constant 0 : index
    %1 = vector.load %arg3[%c0_1, %c0_2] : memref<80x128xbf16, #tpu.memory_space<vmem>>, vector<80x128xbf16>
    %cst = arith.constant dense<0.000000e+00> : vector<32x128xf32>
    %2 = tpu.matmul %0, %1, %cst {dimension_numbers = #tpu.dot_dimension_numbers<[1], [0], [0], [1], [0, 0, 1, 1], [], []>} : vector<32x80xbf16>, vector<80x128xbf16>, vector<32x128xf32> -> vector<32x128xf32>
    %c0_3 = arith.constant 0 : index
    %c0_4 = arith.constant 0 : index
    %3 = vector.load %arg4[%c0_3, %c0_4] : memref<1x128xf32, #tpu.memory_space<vmem>>, vector<1x128xf32>
    %4 = vector.broadcast %3 : vector<1x128xf32> to vector<32x128xf32>
    %5 = arith.addf %2, %4 : vector<32x128xf32>
    %cst_5 = arith.constant 0.000000e+00 : f32
    %6 = vector.broadcast %cst_5 : f32 to vector<32x128xf32>
    %7 = arith.maximumf %5, %6 : vector<32x128xf32>
    %8 = arith.truncf %7 : vector<32x128xf32> to vector<32x128xbf16>
    %c0_6 = arith.constant 0 : index
    %c0_7 = arith.constant 0 : index
    %9 = vector.load %arg5[%c0_6, %c0_7] : memref<32x128xbf16, #tpu.memory_space<vmem>>, vector<32x128xbf16>
    tpu.vector_store %arg5[%c0_6, %c0_7], %8 {strides = array<i32>} : memref<32x128xbf16, #tpu.memory_space<vmem>>, vector<32x128xbf16>,
    return
  }
  func.func @transform_0(%arg0: i32, %arg1: i32) -> (i32, i32) {
    %c0_i32 = arith.constant 0 : i32
    %c0_i32_0 = arith.constant 0 : i32
    return %arg0, %c0_i32 : i32, i32
  }
  func.func @transform_1(%arg0: i32, %arg1: i32) -> (i32, i32) {
    %c0_i32 = arith.constant 0 : i32
    %c0_i32_0 = arith.constant 0 : i32
    return %c0_i32, %arg1 : i32, i32
  }
  func.func @transform_2(%arg0: i32, %arg1: i32) -> (i32, i32) {
    %c0_i32 = arith.constant 0 : i32
    %c0_i32_0 = arith.constant 0 : i32
    return %c0_i32, %arg1 : i32, i32
  }
  func.func @transform_3(%arg0: i32, %arg1: i32) -> (i32, i32) {
    %c0_i32 = arith.constant 0 : i32
    return %arg0, %arg1 : i32, i32
  }
}

module attributes {stable_mosaic.version = 11 : i64} {
  func.func @_gemm_bias_act_fast_kernel(%arg0: i32, %arg1: i32, %arg2: memref<8x144xbf16, #tpu.memory_space<vmem>>, %arg3: memref<144x128xbf16, #tpu.memory_space<vmem>>, %arg4: memref<1x128xf32, #tpu.memory_space<vmem>>, %arg5: memref<8x128xbf16, #tpu.memory_space<vmem>>) attributes {dimension_semantics = [#tpu.dimension_semantics<parallel>, #tpu.dimension_semantics<parallel>], iteration_bounds = array<i64: 1, 1>, scalar_prefetch = 0 : i64, scratch_operands = 0 : i64, tpu.core_type = #tpu.core_type<tc>, window_params = [{transform_indices = @transform_0, window_bounds = array<i64: 8, 144>}, {transform_indices = @transform_1, window_bounds = array<i64: 144, 128>}, {transform_indices = @transform_2, window_bounds = array<i64: 1, 128>}, {transform_indices = @transform_3, window_bounds = array<i64: 8, 128>}]} {
    %c0 = arith.constant 0 : index
    %c0_0 = arith.constant 0 : index
    %0 = vector.load %arg2[%c0, %c0_0] : memref<8x144xbf16, #tpu.memory_space<vmem>>, vector<8x144xbf16>
    %c0_1 = arith.constant 0 : index
    %c0_2 = arith.constant 0 : index
    %1 = vector.load %arg3[%c0_1, %c0_2] : memref<144x128xbf16, #tpu.memory_space<vmem>>, vector<144x128xbf16>
    %cst = arith.constant dense<0.000000e+00> : vector<8x128xf32>
    %2 = tpu.matmul %0, %1, %cst {dimension_numbers = #tpu.dot_dimension_numbers<[1], [0], [0], [1], [0, 0, 1, 1], [], []>} : vector<8x144xbf16>, vector<144x128xbf16>, vector<8x128xf32> -> vector<8x128xf32>
    %c0_3 = arith.constant 0 : index
    %c0_4 = arith.constant 0 : index
    %3 = vector.load %arg4[%c0_3, %c0_4] : memref<1x128xf32, #tpu.memory_space<vmem>>, vector<1x128xf32>
    %4 = vector.broadcast %3 : vector<1x128xf32> to vector<8x128xf32>
    %5 = arith.addf %2, %4 : vector<8x128xf32>
    %cst_5 = arith.constant 0.000000e+00 : f32
    %6 = vector.broadcast %cst_5 : f32 to vector<8x128xf32>
    %7 = arith.maximumf %5, %6 : vector<8x128xf32>
    %8 = arith.truncf %7 : vector<8x128xf32> to vector<8x128xbf16>
    %c0_6 = arith.constant 0 : index
    %c0_7 = arith.constant 0 : index
    %9 = vector.load %arg5[%c0_6, %c0_7] : memref<8x128xbf16, #tpu.memory_space<vmem>>, vector<8x128xbf16>
    tpu.vector_store %arg5[%c0_6, %c0_7], %8 {strides = array<i32>} : memref<8x128xbf16, #tpu.memory_space<vmem>>, vector<8x128xbf16>,
    return
  }
  func.func @transform_0(%arg0: i32, %arg1: i32) -> (i32, i32) {
    %c0_i32 = arith.constant 0 : i32
    %c0_i32_0 = arith.constant 0 : i32
    return %arg0, %c0_i32 : i32, i32
  }
  func.func @transform_1(%arg0: i32, %arg1: i32) -> (i32, i32) {
    %c0_i32 = arith.constant 0 : i32
    %c0_i32_0 = arith.constant 0 : i32
    return %c0_i32, %arg1 : i32, i32
  }
  func.func @transform_2(%arg0: i32, %arg1: i32) -> (i32, i32) {
    %c0_i32 = arith.constant 0 : i32
    %c0_i32_0 = arith.constant 0 : i32
    return %c0_i32, %arg1 : i32, i32
  }
  func.func @transform_3(%arg0: i32, %arg1: i32) -> (i32, i32) {
    %c0_i32 = arith.constant 0 : i32
    return %arg0, %arg1 : i32, i32
  }
}

module attributes {stable_mosaic.version = 11 : i64} {
  func.func @_voxel_head_kernel(%arg0: i32, %arg1: memref<8x288xbf16, #tpu.memory_space<vmem>>, %arg2: memref<288x32xbf16, #tpu.memory_space<vmem>>, %arg3: memref<1x32xf32, #tpu.memory_space<vmem>>, %arg4: memref<32x128xbf16, #tpu.memory_space<vmem>>, %arg5: memref<1x128xf32, #tpu.memory_space<vmem>>, %arg6: memref<8x128xf32, #tpu.memory_space<vmem>>) attributes {dimension_semantics = [#tpu.dimension_semantics<arbitrary>], iteration_bounds = array<i64: 1>, scalar_prefetch = 0 : i64, scratch_operands = 0 : i64, tpu.core_type = #tpu.core_type<tc>, window_params = [{pipeline_mode = #tpu.pipeline_mode<synchronous>, transform_indices = @transform_0, window_bounds = array<i64: 8, 288>}, {pipeline_mode = #tpu.pipeline_mode<synchronous>, transform_indices = @transform_1, window_bounds = array<i64: 288, 32>}, {pipeline_mode = #tpu.pipeline_mode<synchronous>, transform_indices = @transform_2, window_bounds = array<i64: 1, 32>}, {pipeline_mode = #tpu.pipeline_mode<synchronous>, transform_indices = @transform_3, window_bounds = array<i64: 32, 128>}, {pipeline_mode = #tpu.pipeline_mode<synchronous>, transform_indices = @transform_4, window_bounds = array<i64: 1, 128>}, {pipeline_mode = #tpu.pipeline_mode<synchronous>, transform_indices = @transform_5, window_bounds = array<i64: 8, 128>}]} {
    %c0 = arith.constant 0 : index
    %c0_0 = arith.constant 0 : index
    %0 = vector.load %arg1[%c0, %c0_0] : memref<8x288xbf16, #tpu.memory_space<vmem>>, vector<8x288xbf16>
    %c0_1 = arith.constant 0 : index
    %c0_2 = arith.constant 0 : index
    %1 = vector.load %arg2[%c0_1, %c0_2] : memref<288x32xbf16, #tpu.memory_space<vmem>>, vector<288x32xbf16>
    %cst = arith.constant dense<0.000000e+00> : vector<8x32xf32>
    %2 = tpu.matmul %0, %1, %cst {dimension_numbers = #tpu.dot_dimension_numbers<[1], [0], [0], [1], [0, 0, 1, 1], [], []>} : vector<8x288xbf16>, vector<288x32xbf16>, vector<8x32xf32> -> vector<8x32xf32>
    %c0_3 = arith.constant 0 : index
    %c0_4 = arith.constant 0 : index
    %3 = vector.load %arg3[%c0_3, %c0_4] : memref<1x32xf32, #tpu.memory_space<vmem>>, vector<1x32xf32>
    %4 = vector.broadcast %3 : vector<1x32xf32> to vector<8x32xf32>
    %5 = arith.addf %2, %4 : vector<8x32xf32>
    %cst_5 = arith.constant 0.000000e+00 : f32
    %6 = vector.broadcast %cst_5 : f32 to vector<8x32xf32>
    %7 = arith.maximumf %5, %6 : vector<8x32xf32>
    %8 = arith.truncf %7 : vector<8x32xf32> to vector<8x32xbf16>
    %c0_6 = arith.constant 0 : index
    %c0_7 = arith.constant 0 : index
    %9 = vector.load %arg4[%c0_6, %c0_7] : memref<32x128xbf16, #tpu.memory_space<vmem>>, vector<32x128xbf16>
    %cst_8 = arith.constant dense<0.000000e+00> : vector<8x128xf32>
    %10 = tpu.matmul %8, %9, %cst_8 {dimension_numbers = #tpu.dot_dimension_numbers<[1], [0], [0], [1], [0, 0, 1, 1], [], []>} : vector<8x32xbf16>, vector<32x128xbf16>, vector<8x128xf32> -> vector<8x128xf32>
    %c0_9 = arith.constant 0 : index
    %c0_10 = arith.constant 0 : index
    %11 = vector.load %arg5[%c0_9, %c0_10] : memref<1x128xf32, #tpu.memory_space<vmem>>, vector<1x128xf32>
    %12 = vector.broadcast %11 : vector<1x128xf32> to vector<8x128xf32>
    %13 = arith.addf %10, %12 : vector<8x128xf32>
    %c0_11 = arith.constant 0 : index
    %c0_12 = arith.constant 0 : index
    %14 = vector.load %arg6[%c0_11, %c0_12] : memref<8x128xf32, #tpu.memory_space<vmem>>, vector<8x128xf32>
    tpu.vector_store %arg6[%c0_11, %c0_12], %13 {strides = array<i32>} : memref<8x128xf32, #tpu.memory_space<vmem>>, vector<8x128xf32>,
    return
  }
  func.func @transform_0(%arg0: i32) -> (i32, i32) {
    %c0_i32 = arith.constant 0 : i32
    %c0_i32_0 = arith.constant 0 : i32
    %c0_i32_1 = arith.constant 0 : i32
    return %c0_i32, %c0_i32_0 : i32, i32
  }
  func.func @transform_1(%arg0: i32) -> (i32, i32) {
    %c0_i32 = arith.constant 0 : i32
    %c0_i32_0 = arith.constant 0 : i32
    %c0_i32_1 = arith.constant 0 : i32
    return %c0_i32, %c0_i32_0 : i32, i32
  }
  func.func @transform_2(%arg0: i32) -> (i32, i32) {
    %c0_i32 = arith.constant 0 : i32
    %c0_i32_0 = arith.constant 0 : i32
    %c0_i32_1 = arith.constant 0 : i32
    return %c0_i32, %c0_i32_0 : i32, i32
  }
  func.func @transform_3(%arg0: i32) -> (i32, i32) {
    %c0_i32 = arith.constant 0 : i32
    %c0_i32_0 = arith.constant 0 : i32
    %c0_i32_1 = arith.constant 0 : i32
    return %c0_i32, %c0_i32_0 : i32, i32
  }
  func.func @transform_4(%arg0: i32) -> (i32, i32) {
    %c0_i32 = arith.constant 0 : i32
    %c0_i32_0 = arith.constant 0 : i32
    %c0_i32_1 = arith.constant 0 : i32
    return %c0_i32, %c0_i32_0 : i32, i32
  }
  func.func @transform_5(%arg0: i32) -> (i32, i32) {
    %c0_i32 = arith.constant 0 : i32
    %c0_i32_0 = arith.constant 0 : i32
    %c0_i32_1 = arith.constant 0 : i32
    return %c0_i32, %c0_i32_0 : i32, i32
  }
}

module attributes {stable_mosaic.version = 11 : i64} {
  func.func @_mesh_refine_kernel(%arg0: i32, %arg1: memref<16x64xbf16, #tpu.memory_space<vmem>>, %arg2: memref<16x8xbf16, #tpu.memory_space<vmem>>, %arg3: memref<16x16xbf16, #tpu.memory_space<vmem>>, %arg4: memref<16x1xf32, #tpu.memory_space<vmem>>, %arg5: memref<64x32xbf16, #tpu.memory_space<vmem>>, %arg6: memref<1x32xf32, #tpu.memory_space<vmem>>, %arg7: memref<32x32xbf16, #tpu.memory_space<vmem>>, %arg8: memref<8x32xbf16, #tpu.memory_space<vmem>>, %arg9: memref<1x32xf32, #tpu.memory_space<vmem>>, %arg10: memref<32x32xbf16, #tpu.memory_space<vmem>>, %arg11: memref<8x32xbf16, #tpu.memory_space<vmem>>, %arg12: memref<1x32xf32, #tpu.memory_space<vmem>>, %arg13: memref<32x32xbf16, #tpu.memory_space<vmem>>, %arg14: memref<8x32xbf16, #tpu.memory_space<vmem>>, %arg15: memref<1x32xf32, #tpu.memory_space<vmem>>, %arg16: memref<32x32xbf16, #tpu.memory_space<vmem>>, %arg17: memref<8x32xbf16, #tpu.memory_space<vmem>>, %arg18: memref<1x32xf32, #tpu.memory_space<vmem>>, %arg19: memref<32x128xbf16, #tpu.memory_space<vmem>>, %arg20: memref<8x128xbf16, #tpu.memory_space<vmem>>, %arg21: memref<1x128xf32, #tpu.memory_space<vmem>>, %arg22: memref<16x128xf32, #tpu.memory_space<vmem>>) attributes {dimension_semantics = [#tpu.dimension_semantics<arbitrary>], iteration_bounds = array<i64: 1>, scalar_prefetch = 0 : i64, scratch_operands = 0 : i64, tpu.core_type = #tpu.core_type<tc>, window_params = [{pipeline_mode = #tpu.pipeline_mode<synchronous>, transform_indices = @transform_0, window_bounds = array<i64: 16, 64>}, {pipeline_mode = #tpu.pipeline_mode<synchronous>, transform_indices = @transform_1, window_bounds = array<i64: 16, 8>}, {pipeline_mode = #tpu.pipeline_mode<synchronous>, transform_indices = @transform_2, window_bounds = array<i64: 16, 16>}, {pipeline_mode = #tpu.pipeline_mode<synchronous>, transform_indices = @transform_3, window_bounds = array<i64: 16, 1>}, {pipeline_mode = #tpu.pipeline_mode<synchronous>, transform_indices = @transform_4, window_bounds = array<i64: 64, 32>}, {pipeline_mode = #tpu.pipeline_mode<synchronous>, transform_indices = @transform_5, window_bounds = array<i64: 1, 32>}, {pipeline_mode = #tpu.pipeline_mode<synchronous>, transform_indices = @transform_6, window_bounds = array<i64: 32, 32>}, {pipeline_mode = #tpu.pipeline_mode<synchronous>, transform_indices = @transform_7, window_bounds = array<i64: 8, 32>}, {pipeline_mode = #tpu.pipeline_mode<synchronous>, transform_indices = @transform_8, window_bounds = array<i64: 1, 32>}, {pipeline_mode = #tpu.pipeline_mode<synchronous>, transform_indices = @transform_9, window_bounds = array<i64: 32, 32>}, {pipeline_mode = #tpu.pipeline_mode<synchronous>, transform_indices = @transform_10, window_bounds = array<i64: 8, 32>}, {pipeline_mode = #tpu.pipeline_mode<synchronous>, transform_indices = @transform_11, window_bounds = array<i64: 1, 32>}, {pipeline_mode = #tpu.pipeline_mode<synchronous>, transform_indices = @transform_12, window_bounds = array<i64: 32, 32>}, {pipeline_mode = #tpu.pipeline_mode<synchronous>, transform_indices = @transform_13, window_bounds = array<i64: 8, 32>}, {pipeline_mode = #tpu.pipeline_mode<synchronous>, transform_indices = @transform_14, window_bounds = array<i64: 1, 32>}, {pipeline_mode = #tpu.pipeline_mode<synchronous>, transform_indices = @transform_15, window_bounds = array<i64: 32, 32>}, {pipeline_mode = #tpu.pipeline_mode<synchronous>, transform_indices = @transform_16, window_bounds = array<i64: 8, 32>}, {pipeline_mode = #tpu.pipeline_mode<synchronous>, transform_indices = @transform_17, window_bounds = array<i64: 1, 32>}, {pipeline_mode = #tpu.pipeline_mode<synchronous>, transform_indices = @transform_18, window_bounds = array<i64: 32, 128>}, {pipeline_mode = #tpu.pipeline_mode<synchronous>, transform_indices = @transform_19, window_bounds = array<i64: 8, 128>}, {pipeline_mode = #tpu.pipeline_mode<synchronous>, transform_indices = @transform_20, window_bounds = array<i64: 1, 128>}, {pipeline_mode = #tpu.pipeline_mode<synchronous>, transform_indices = @transform_21, window_bounds = array<i64: 16, 128>}]} {
    %c0 = arith.constant 0 : index
    %c0_0 = arith.constant 0 : index
    %0 = vector.load %arg2[%c0, %c0_0] : memref<16x8xbf16, #tpu.memory_space<vmem>>, vector<16x8xbf16>
    %c0_1 = arith.constant 0 : index
    %c0_2 = arith.constant 0 : index
    %1 = vector.load %arg3[%c0_1, %c0_2] : memref<16x16xbf16, #tpu.memory_space<vmem>>, vector<16x16xbf16>
    %c0_3 = arith.constant 0 : index
    %c0_4 = arith.constant 0 : index
    %2 = vector.load %arg4[%c0_3, %c0_4] : memref<16x1xf32, #tpu.memory_space<vmem>>, vector<16x1xf32>
    %cst = arith.constant dense<0.000000e+00> : vector<16x8xf32>
    %3 = tpu.matmul %1, %0, %cst {dimension_numbers = #tpu.dot_dimension_numbers<[1], [0], [0], [1], [0, 0, 1, 1], [], []>} : vector<16x16xbf16>, vector<16x8xbf16>, vector<16x8xf32> -> vector<16x8xf32>
    %4 = arith.truncf %3 : vector<16x8xf32> to vector<16x8xbf16>
    %c0_5 = arith.constant 0 : index
    %c0_6 = arith.constant 0 : index
    %5 = vector.load %arg1[%c0_5, %c0_6] : memref<16x64xbf16, #tpu.memory_space<vmem>>, vector<16x64xbf16>
    %c0_7 = arith.constant 0 : index
    %c0_8 = arith.constant 0 : index
    %6 = vector.load %arg5[%c0_7, %c0_8] : memref<64x32xbf16, #tpu.memory_space<vmem>>, vector<64x32xbf16>
    %cst_9 = arith.constant dense<0.000000e+00> : vector<16x32xf32>
    %7 = tpu.matmul %5, %6, %cst_9 {dimension_numbers = #tpu.dot_dimension_numbers<[1], [0], [0], [1], [0, 0, 1, 1], [], []>} : vector<16x64xbf16>, vector<64x32xbf16>, vector<16x32xf32> -> vector<16x32xf32>
    %c0_10 = arith.constant 0 : index
    %c0_11 = arith.constant 0 : index
    %8 = vector.load %arg6[%c0_10, %c0_11] : memref<1x32xf32, #tpu.memory_space<vmem>>, vector<1x32xf32>
    %9 = vector.broadcast %8 : vector<1x32xf32> to vector<16x32xf32>
    %10 = arith.addf %7, %9 : vector<16x32xf32>
    %cst_12 = arith.constant 0.000000e+00 : f32
    %11 = vector.broadcast %cst_12 : f32 to vector<16x32xf32>
    %12 = arith.maximumf %10, %11 : vector<16x32xf32>
    %13 = arith.truncf %12 : vector<16x32xf32> to vector<16x32xbf16>
    %cst_13 = arith.constant dense<0.000000e+00> : vector<16x32xf32>
    %14 = tpu.matmul %1, %13, %cst_13 {dimension_numbers = #tpu.dot_dimension_numbers<[1], [0], [0], [1], [0, 0, 1, 1], [], []>} : vector<16x16xbf16>, vector<16x32xbf16>, vector<16x32xf32> -> vector<16x32xf32>
    %15 = arith.truncf %14 : vector<16x32xf32> to vector<16x32xbf16>
    %c0_14 = arith.constant 0 : index
    %c0_15 = arith.constant 0 : index
    %16 = vector.load %arg7[%c0_14, %c0_15] : memref<32x32xbf16, #tpu.memory_space<vmem>>, vector<32x32xbf16>
    %cst_16 = arith.constant dense<0.000000e+00> : vector<16x32xf32>
    %17 = tpu.matmul %13, %16, %cst_16 {dimension_numbers = #tpu.dot_dimension_numbers<[1], [0], [0], [1], [0, 0, 1, 1], [], []>} : vector<16x32xbf16>, vector<32x32xbf16>, vector<16x32xf32> -> vector<16x32xf32>
    %c0_17 = arith.constant 0 : index
    %c0_18 = arith.constant 0 : index
    %18 = vector.load %arg8[%c0_17, %c0_18] : memref<8x32xbf16, #tpu.memory_space<vmem>>, vector<8x32xbf16>
    %cst_19 = arith.constant dense<0.000000e+00> : vector<16x32xf32>
    %19 = tpu.matmul %0, %18, %cst_19 {dimension_numbers = #tpu.dot_dimension_numbers<[1], [0], [0], [1], [0, 0, 1, 1], [], []>} : vector<16x8xbf16>, vector<8x32xbf16>, vector<16x32xf32> -> vector<16x32xf32>
    %20 = arith.addf %17, %19 : vector<16x32xf32>
    %c0_20 = arith.constant 0 : index
    %c0_21 = arith.constant 0 : index
    %21 = vector.load %arg9[%c0_20, %c0_21] : memref<1x32xf32, #tpu.memory_space<vmem>>, vector<1x32xf32>
    %22 = vector.broadcast %21 : vector<1x32xf32> to vector<16x32xf32>
    %23 = arith.addf %20, %22 : vector<16x32xf32>
    %c0_22 = arith.constant 0 : index
    %c0_23 = arith.constant 0 : index
    %24 = vector.load %arg10[%c0_22, %c0_23] : memref<32x32xbf16, #tpu.memory_space<vmem>>, vector<32x32xbf16>
    %cst_24 = arith.constant dense<0.000000e+00> : vector<16x32xf32>
    %25 = tpu.matmul %15, %24, %cst_24 {dimension_numbers = #tpu.dot_dimension_numbers<[1], [0], [0], [1], [0, 0, 1, 1], [], []>} : vector<16x32xbf16>, vector<32x32xbf16>, vector<16x32xf32> -> vector<16x32xf32>
    %26 = arith.addf %23, %25 : vector<16x32xf32>
    %c0_25 = arith.constant 0 : index
    %c0_26 = arith.constant 0 : index
    %27 = vector.load %arg11[%c0_25, %c0_26] : memref<8x32xbf16, #tpu.memory_space<vmem>>, vector<8x32xbf16>
    %cst_27 = arith.constant dense<0.000000e+00> : vector<16x32xf32>
    %28 = tpu.matmul %4, %27, %cst_27 {dimension_numbers = #tpu.dot_dimension_numbers<[1], [0], [0], [1], [0, 0, 1, 1], [], []>} : vector<16x8xbf16>, vector<8x32xbf16>, vector<16x32xf32> -> vector<16x32xf32>
    %29 = arith.addf %26, %28 : vector<16x32xf32>
    %c0_28 = arith.constant 0 : index
    %c0_29 = arith.constant 0 : index
    %30 = vector.load %arg12[%c0_28, %c0_29] : memref<1x32xf32, #tpu.memory_space<vmem>>, vector<1x32xf32>
    %31 = vector.broadcast %2 : vector<16x1xf32> to vector<16x32xf32>
    %32 = vector.broadcast %30 : vector<1x32xf32> to vector<16x32xf32>
    %33 = arith.mulf %31, %32 : vector<16x32xf32>
    %34 = arith.addf %29, %33 : vector<16x32xf32>
    %cst_30 = arith.constant 0.000000e+00 : f32
    %35 = vector.broadcast %cst_30 : f32 to vector<16x32xf32>
    %36 = arith.maximumf %34, %35 : vector<16x32xf32>
    %37 = arith.truncf %36 : vector<16x32xf32> to vector<16x32xbf16>
    %cst_31 = arith.constant dense<0.000000e+00> : vector<16x32xf32>
    %38 = tpu.matmul %1, %37, %cst_31 {dimension_numbers = #tpu.dot_dimension_numbers<[1], [0], [0], [1], [0, 0, 1, 1], [], []>} : vector<16x16xbf16>, vector<16x32xbf16>, vector<16x32xf32> -> vector<16x32xf32>
    %39 = arith.truncf %38 : vector<16x32xf32> to vector<16x32xbf16>
    %c0_32 = arith.constant 0 : index
    %c0_33 = arith.constant 0 : index
    %40 = vector.load %arg13[%c0_32, %c0_33] : memref<32x32xbf16, #tpu.memory_space<vmem>>, vector<32x32xbf16>
    %cst_34 = arith.constant dense<0.000000e+00> : vector<16x32xf32>
    %41 = tpu.matmul %37, %40, %cst_34 {dimension_numbers = #tpu.dot_dimension_numbers<[1], [0], [0], [1], [0, 0, 1, 1], [], []>} : vector<16x32xbf16>, vector<32x32xbf16>, vector<16x32xf32> -> vector<16x32xf32>
    %c0_35 = arith.constant 0 : index
    %c0_36 = arith.constant 0 : index
    %42 = vector.load %arg14[%c0_35, %c0_36] : memref<8x32xbf16, #tpu.memory_space<vmem>>, vector<8x32xbf16>
    %cst_37 = arith.constant dense<0.000000e+00> : vector<16x32xf32>
    %43 = tpu.matmul %0, %42, %cst_37 {dimension_numbers = #tpu.dot_dimension_numbers<[1], [0], [0], [1], [0, 0, 1, 1], [], []>} : vector<16x8xbf16>, vector<8x32xbf16>, vector<16x32xf32> -> vector<16x32xf32>
    %44 = arith.addf %41, %43 : vector<16x32xf32>
    %c0_38 = arith.constant 0 : index
    %c0_39 = arith.constant 0 : index
    %45 = vector.load %arg15[%c0_38, %c0_39] : memref<1x32xf32, #tpu.memory_space<vmem>>, vector<1x32xf32>
    %46 = vector.broadcast %45 : vector<1x32xf32> to vector<16x32xf32>
    %47 = arith.addf %44, %46 : vector<16x32xf32>
    %c0_40 = arith.constant 0 : index
    %c0_41 = arith.constant 0 : index
    %48 = vector.load %arg16[%c0_40, %c0_41] : memref<32x32xbf16, #tpu.memory_space<vmem>>, vector<32x32xbf16>
    %cst_42 = arith.constant dense<0.000000e+00> : vector<16x32xf32>
    %49 = tpu.matmul %39, %48, %cst_42 {dimension_numbers = #tpu.dot_dimension_numbers<[1], [0], [0], [1], [0, 0, 1, 1], [], []>} : vector<16x32xbf16>, vector<32x32xbf16>, vector<16x32xf32> -> vector<16x32xf32>
    %50 = arith.addf %47, %49 : vector<16x32xf32>
    %c0_43 = arith.constant 0 : index
    %c0_44 = arith.constant 0 : index
    %51 = vector.load %arg17[%c0_43, %c0_44] : memref<8x32xbf16, #tpu.memory_space<vmem>>, vector<8x32xbf16>
    %cst_45 = arith.constant dense<0.000000e+00> : vector<16x32xf32>
    %52 = tpu.matmul %4, %51, %cst_45 {dimension_numbers = #tpu.dot_dimension_numbers<[1], [0], [0], [1], [0, 0, 1, 1], [], []>} : vector<16x8xbf16>, vector<8x32xbf16>, vector<16x32xf32> -> vector<16x32xf32>
    %53 = arith.addf %50, %52 : vector<16x32xf32>
    %c0_46 = arith.constant 0 : index
    %c0_47 = arith.constant 0 : index
    %54 = vector.load %arg18[%c0_46, %c0_47] : memref<1x32xf32, #tpu.memory_space<vmem>>, vector<1x32xf32>
    %55 = vector.broadcast %2 : vector<16x1xf32> to vector<16x32xf32>
    %56 = vector.broadcast %54 : vector<1x32xf32> to vector<16x32xf32>
    %57 = arith.mulf %55, %56 : vector<16x32xf32>
    %58 = arith.addf %53, %57 : vector<16x32xf32>
    %cst_48 = arith.constant 0.000000e+00 : f32
    %59 = vector.broadcast %cst_48 : f32 to vector<16x32xf32>
    %60 = arith.maximumf %58, %59 : vector<16x32xf32>
    %61 = arith.truncf %60 : vector<16x32xf32> to vector<16x32xbf16>
    %c0_49 = arith.constant 0 : index
    %c0_50 = arith.constant 0 : index
    %62 = vector.load %arg19[%c0_49, %c0_50] : memref<32x128xbf16, #tpu.memory_space<vmem>>, vector<32x128xbf16>
    %cst_51 = arith.constant dense<0.000000e+00> : vector<16x128xf32>
    %63 = tpu.matmul %61, %62, %cst_51 {dimension_numbers = #tpu.dot_dimension_numbers<[1], [0], [0], [1], [0, 0, 1, 1], [], []>} : vector<16x32xbf16>, vector<32x128xbf16>, vector<16x128xf32> -> vector<16x128xf32>
    %c0_52 = arith.constant 0 : index
    %c0_53 = arith.constant 0 : index
    %64 = vector.load %arg20[%c0_52, %c0_53] : memref<8x128xbf16, #tpu.memory_space<vmem>>, vector<8x128xbf16>
    %cst_54 = arith.constant dense<0.000000e+00> : vector<16x128xf32>
    %65 = tpu.matmul %0, %64, %cst_54 {dimension_numbers = #tpu.dot_dimension_numbers<[1], [0], [0], [1], [0, 0, 1, 1], [], []>} : vector<16x8xbf16>, vector<8x128xbf16>, vector<16x128xf32> -> vector<16x128xf32>
    %66 = arith.addf %63, %65 : vector<16x128xf32>
    %c0_55 = arith.constant 0 : index
    %c0_56 = arith.constant 0 : index
    %67 = vector.load %arg21[%c0_55, %c0_56] : memref<1x128xf32, #tpu.memory_space<vmem>>, vector<1x128xf32>
    %68 = vector.broadcast %67 : vector<1x128xf32> to vector<16x128xf32>
    %69 = arith.addf %66, %68 : vector<16x128xf32>
    %70 = math.tanh %69 : vector<16x128xf32>
    %c0_57 = arith.constant 0 : index
    %c0_58 = arith.constant 0 : index
    %71 = vector.load %arg22[%c0_57, %c0_58] : memref<16x128xf32, #tpu.memory_space<vmem>>, vector<16x128xf32>
    tpu.vector_store %arg22[%c0_57, %c0_58], %70 {strides = array<i32>} : memref<16x128xf32, #tpu.memory_space<vmem>>, vector<16x128xf32>,
    return
  }
  func.func @transform_0(%arg0: i32) -> (i32, i32) {
    %c0_i32 = arith.constant 0 : i32
    %c0_i32_0 = arith.constant 0 : i32
    %c0_i32_1 = arith.constant 0 : i32
    return %c0_i32, %c0_i32_0 : i32, i32
  }
  func.func @transform_1(%arg0: i32) -> (i32, i32) {
    %c0_i32 = arith.constant 0 : i32
    %c0_i32_0 = arith.constant 0 : i32
    %c0_i32_1 = arith.constant 0 : i32
    return %c0_i32, %c0_i32_0 : i32, i32
  }
  func.func @transform_2(%arg0: i32) -> (i32, i32) {
    %c0_i32 = arith.constant 0 : i32
    %c0_i32_0 = arith.constant 0 : i32
    %c0_i32_1 = arith.constant 0 : i32
    return %c0_i32, %c0_i32_0 : i32, i32
  }
  func.func @transform_3(%arg0: i32) -> (i32, i32) {
    %c0_i32 = arith.constant 0 : i32
    %c0_i32_0 = arith.constant 0 : i32
    %c0_i32_1 = arith.constant 0 : i32
    return %c0_i32, %c0_i32_0 : i32, i32
  }
  func.func @transform_4(%arg0: i32) -> (i32, i32) {
    %c0_i32 = arith.constant 0 : i32
    %c0_i32_0 = arith.constant 0 : i32
    %c0_i32_1 = arith.constant 0 : i32
    return %c0_i32, %c0_i32_0 : i32, i32
  }
  func.func @transform_5(%arg0: i32) -> (i32, i32) {
    %c0_i32 = arith.constant 0 : i32
    %c0_i32_0 = arith.constant 0 : i32
    %c0_i32_1 = arith.constant 0 : i32
    return %c0_i32, %c0_i32_0 : i32, i32
  }
  func.func @transform_6(%arg0: i32) -> (i32, i32) {
    %c0_i32 = arith.constant 0 : i32
    %c0_i32_0 = arith.constant 0 : i32
    %c0_i32_1 = arith.constant 0 : i32
    return %c0_i32, %c0_i32_0 : i32, i32
  }
  func.func @transform_7(%arg0: i32) -> (i32, i32) {
    %c0_i32 = arith.constant 0 : i32
    %c0_i32_0 = arith.constant 0 : i32
    %c0_i32_1 = arith.constant 0 : i32
    return %c0_i32, %c0_i32_0 : i32, i32
  }
  func.func @transform_8(%arg0: i32) -> (i32, i32) {
    %c0_i32 = arith.constant 0 : i32
    %c0_i32_0 = arith.constant 0 : i32
    %c0_i32_1 = arith.constant 0 : i32
    return %c0_i32, %c0_i32_0 : i32, i32
  }
  func.func @transform_9(%arg0: i32) -> (i32, i32) {
    %c0_i32 = arith.constant 0 : i32
    %c0_i32_0 = arith.constant 0 : i32
    %c0_i32_1 = arith.constant 0 : i32
    return %c0_i32, %c0_i32_0 : i32, i32
  }
  func.func @transform_10(%arg0: i32) -> (i32, i32) {
    %c0_i32 = arith.constant 0 : i32
    %c0_i32_0 = arith.constant 0 : i32
    %c0_i32_1 = arith.constant 0 : i32
    return %c0_i32, %c0_i32_0 : i32, i32
  }
  func.func @transform_11(%arg0: i32) -> (i32, i32) {
    %c0_i32 = arith.constant 0 : i32
    %c0_i32_0 = arith.constant 0 : i32
    %c0_i32_1 = arith.constant 0 : i32
    return %c0_i32, %c0_i32_0 : i32, i32
  }
  func.func @transform_12(%arg0: i32) -> (i32, i32) {
    %c0_i32 = arith.constant 0 : i32
    %c0_i32_0 = arith.constant 0 : i32
    %c0_i32_1 = arith.constant 0 : i32
    return %c0_i32, %c0_i32_0 : i32, i32
  }
  func.func @transform_13(%arg0: i32) -> (i32, i32) {
    %c0_i32 = arith.constant 0 : i32
    %c0_i32_0 = arith.constant 0 : i32
    %c0_i32_1 = arith.constant 0 : i32
    return %c0_i32, %c0_i32_0 : i32, i32
  }
  func.func @transform_14(%arg0: i32) -> (i32, i32) {
    %c0_i32 = arith.constant 0 : i32
    %c0_i32_0 = arith.constant 0 : i32
    %c0_i32_1 = arith.constant 0 : i32
    return %c0_i32, %c0_i32_0 : i32, i32
  }
  func.func @transform_15(%arg0: i32) -> (i32, i32) {
    %c0_i32 = arith.constant 0 : i32
    %c0_i32_0 = arith.constant 0 : i32
    %c0_i32_1 = arith.constant 0 : i32
    return %c0_i32, %c0_i32_0 : i32, i32
  }
  func.func @transform_16(%arg0: i32) -> (i32, i32) {
    %c0_i32 = arith.constant 0 : i32
    %c0_i32_0 = arith.constant 0 : i32
    %c0_i32_1 = arith.constant 0 : i32
    return %c0_i32, %c0_i32_0 : i32, i32
  }
  func.func @transform_17(%arg0: i32) -> (i32, i32) {
    %c0_i32 = arith.constant 0 : i32
    %c0_i32_0 = arith.constant 0 : i32
    %c0_i32_1 = arith.constant 0 : i32
    return %c0_i32, %c0_i32_0 : i32, i32
  }
  func.func @transform_18(%arg0: i32) -> (i32, i32) {
    %c0_i32 = arith.constant 0 : i32
    %c0_i32_0 = arith.constant 0 : i32
    %c0_i32_1 = arith.constant 0 : i32
    return %c0_i32, %c0_i32_0 : i32, i32
  }
  func.func @transform_19(%arg0: i32) -> (i32, i32) {
    %c0_i32 = arith.constant 0 : i32
    %c0_i32_0 = arith.constant 0 : i32
    %c0_i32_1 = arith.constant 0 : i32
    return %c0_i32, %c0_i32_0 : i32, i32
  }
  func.func @transform_20(%arg0: i32) -> (i32, i32) {
    %c0_i32 = arith.constant 0 : i32
    %c0_i32_0 = arith.constant 0 : i32
    %c0_i32_1 = arith.constant 0 : i32
    return %c0_i32, %c0_i32_0 : i32, i32
  }
  func.func @transform_21(%arg0: i32) -> (i32, i32) {
    %c0_i32 = arith.constant 0 : i32
    %c0_i32_0 = arith.constant 0 : i32
    %c0_i32_1 = arith.constant 0 : i32
    return %c0_i32, %c0_i32_0 : i32, i32
  }
}

</mosaic_0001>

<llo_original>
// kernel: vox_mesh_head_forward.6
$region0: #{vox_mesh_head_forward.6}
  #allocation0 [shape = 'u32[]', space=smem, size = 0x4, offset = 0x4, fixed_abs, tag = 'smem constant byte address 0x4 - core index']
  #allocation1 [shape = 'u32[144,128]{1,0:T(1,128)}', space=vmem, size = 0x12000, scoped, tag = 'internal scratch']
  %s0 = inlined_call_operand.vmem [shape: bf16[32,80], index: 0, kind: input, shape index: {}]
  %s1 = inlined_call_operand.vmem [shape: bf16[80,128], index: 1, kind: input, shape index: {}]
  %s2 = inlined_call_operand.vmem [shape: f32[1,128], index: 2, kind: input, shape index: {}]
  %s3 = inlined_call_operand.vmem [shape: bf16[32,128], index: 3, kind: output, shape index: {}]
  %s4 = sld [smem:[#allocation0]]
  $region22: #{vox_mesh_head_forward.6} parent=0
    _
  %s6 = ssub.s32 1, %s4
  %s7 = scalar_select 0, %s6, %s4
  // Predicated region
  $region2: #{vox_mesh_head_forward.6} parent=0 // pred_check
    _
  $region3: #{vox_mesh_head_forward.6} parent=0 // pred_check_branch
    %9 = sbr.rel (0) target = $region5
  $region4: #{vox_mesh_head_forward.6} parent=0 // pred_region
    _
  $region5: #{vox_mesh_head_forward.6} parent=0 // pred_fallthru
    _
  // Predicated region
  $region6: #{vox_mesh_head_forward.6} parent=0 // pred_check
    _
  $region7: #{vox_mesh_head_forward.6} parent=0 // pred_check_branch
    %11 = sbr.rel (0) target = $region9
  $region8: #{vox_mesh_head_forward.6} parent=0 // pred_region
    _
  $region9: #{vox_mesh_head_forward.6} parent=0 // pred_fallthru
    _
  // Predicated region
  $region10: #{vox_mesh_head_forward.6} parent=0 // pred_check
    _
  $region11: #{vox_mesh_head_forward.6} parent=0 // pred_check_branch
    %13 = sbr.rel (0) target = $region13
  $region12: #{vox_mesh_head_forward.6} parent=0 // pred_region
    _
  $region13: #{vox_mesh_head_forward.6} parent=0 // pred_fallthru
    _
  %v15 = vld [vmem:[%s0] sm:$0xf]
  %v16 = vld [vmem:[%s0 + $0x4] sm:$0xf]
  %v17 = vld [vmem:[%s0 + $0x8] sm:$0xf]
  %v18 = vld [vmem:[%s0 + $0xc] sm:$0xf]
  %v19 = vld [vmem:[%s1] sm:$0xf]
  %v20 = vld [vmem:[%s1 + $0x4] sm:$0xf]
  %v21 = vld [vmem:[%s1 + $0x8] sm:$0xf]
  %v22 = vld [vmem:[%s1 + $0xc] sm:$0xf]
  %v23 = vld [vmem:[%s1 + $0x10] sm:$0xf]
  %v24 = vld [vmem:[%s1 + $0x14] sm:$0xf]
  %v25 = vld [vmem:[%s1 + $0x18] sm:$0xf]
  %v26 = vld [vmem:[%s1 + $0x1c] sm:$0xf]
  %v27 = vld [vmem:[%s1 + $0x20] sm:$0xf]
  %v28 = vld [vmem:[%s1 + $0x24] sm:$0xf]
  %v29 = vld [vmem:[%s2] sm:$0x1]
  %v31 = vlaneseq
  %v32 = vshrl.u32 %v31, 7
  %v33 = vsub.s32 0, %v32
  %v34 = vrot.slane %v29, %v33
  %v40 = vunpack.c.l.b16 %v15
  %v41 = vunpack.c.l.b16 %v16
  %v42 = vunpack.c.l.b16 %v17
  %v43 = vunpack.c.l.b16 %v18
  %v44 = vpack.c.b16 %v41, %v40
  %v45 = vpack.c.b16 %v43, %v42
  %v56 = vunpack.c.l.b16 %v19
  %v57 = vunpack.c.l.b16 %v20
  %v58 = vunpack.c.l.b16 %v21
  %v59 = vunpack.c.l.b16 %v22
  %v60 = vunpack.c.l.b16 %v23
  %v61 = vunpack.c.l.b16 %v24
  %v62 = vunpack.c.l.b16 %v25
  %v63 = vunpack.c.l.b16 %v26
  %v64 = vunpack.c.l.b16 %v27
  %v65 = vunpack.c.l.b16 %v28
  %v66 = vpack.c.b16 %v57, %v56
  %v67 = vpack.c.b16 %v59, %v58
  %v68 = vpack.c.b16 %v61, %v60
  %v69 = vpack.c.b16 %v63, %v62
  %v70 = vpack.c.b16 %v65, %v64
  %vm76 = vcmask 654336
  %v78 = vsel %vm76, %v44, 0
  %v81 = vsel %vm76, %v45, 0
  %83 = vmatprep.subr.bf16.mxu0 0
  %84 = vmatpush1.bf16.msra.mxu0 %v66
  %85 = vmatprep.subr.bf16.mxu0 0
  %86 = vmatpush1.bf16.msra.mxu0 %v67
  %87 = vmatprep.subr.bf16.mxu0 0
  %88 = vmatpush1.bf16.msra.mxu0 %v68
  %89 = vmatprep.subr.bf16.mxu0 0
  %90 = vmatpush1.bf16.msra.mxu0 %v69
  %91 = vmatprep.subr.bf16.mxu0 0
  %92 = vmatpush1.bf16.msra.mxu0 %v70
  %93 = vmatprep.subr.bf16.mxu0 0
  %94 = vmatpush1.bf16.msra.mxu0 0
  %95 = vmatprep.subr.bf16.mxu0 0
  %96 = vmatpush1.bf16.msra.mxu0 0
  %97 = vmatprep.subr.bf16.mxu0 0
  %98 = vmatpush1.bf16.msra.mxu0 0
  %99 = vmatprep.subr.bf16.mxu0 0
  %100 = vmatpush1.bf16.msra.mxu0 0
  %101 = vmatprep.subr.bf16.mxu0 0
  %102 = vmatpush1.bf16.msra.mxu0 0
  %103 = vmatprep.subr.bf16.mxu0 0
  %104 = vmatpush1.bf16.msra.mxu0 0
  %105 = vmatprep.subr.bf16.mxu0 0
  %106 = vmatpush1.bf16.msra.mxu0 0
  %107 = vmatprep.subr.bf16.mxu0 0
  %108 = vmatpush1.bf16.msra.mxu0 0
  %109 = vmatprep.subr.bf16.mxu0 0
  %110 = vmatpush1.bf16.msra.mxu0 0
  %111 = vmatprep.subr.bf16.mxu0 0
  %112 = vmatpush1.bf16.msra.mxu0 0
  %113 = vmatprep.subr.bf16.mxu0 0
  %114 = vmatpush1.bf16.msra.mxu0 0
  %115 = vmatprep.mubr.bf16.mxu0 0
  %116 = vmatmul.mubr.bf16.gmra.mrb[0].mxu0 %v78
  %v117 = vpop.f32.mrb[0].mxu0
  %v118 = vadd.f32 %v34, %v117
  %v119 = vpop.f32.mrb[0].mxu0
  %v120 = vpop.f32.mrb[0].mxu0
  %v121 = vadd.f32 %v34, %v120
  %v122 = vpop.f32.mrb[0].mxu0
  %123 = vmatprep.mubr.bf16.mxu0 0
  %124 = vmatmul.mubr.bf16.gmra.mrb[0].mxu0 %v81
  %v125 = vpop.f32.mrb[0].mxu0
  %v126 = vadd.f32 %v34, %v125
  %v127 = vpop.f32.mrb[0].mxu0
  %v128 = vpop.f32.mrb[0].mxu0
  %v129 = vadd.f32 %v34, %v128
  %v130 = vpop.f32.mrb[0].mxu0
  %131 = vdwg.mxu0
  %v132 = vmax.f32 %v118, 0.0
  %v133 = vmax.f32 %v121, 0.0
  %v134 = vmax.f32 %v126, 0.0
  %v135 = vmax.f32 %v129, 0.0
  %v136 = vpack.c.bf16 %v133, %v132
  %v137 = vpack.c.bf16 %v135, %v134
  %v140 = vunpack.c.l.b16 %v136
  %v141 = vunpack.c.h.b16 %v136
  %v142 = vunpack.c.l.b16 %v137
  %v143 = vunpack.c.h.b16 %v137
  %v144 = vpack.c.b16 %v140, %v140
  %v145 = vpack.c.b16 %v141, %v141
  %v146 = vpack.c.b16 %v142, %v142
  %v147 = vpack.c.b16 %v143, %v143
  %152 = vst [vmem:[%s3] sm:$0xf] %v144
  %153 = vst [vmem:[%s3 + $0x4] sm:$0xf] %v145
  %154 = vst [vmem:[%s3 + $0x8] sm:$0xf] %v146
  %155 = vst [vmem:[%s3 + $0xc] sm:$0xf] %v147
  // Predicated region
  $region14: #{vox_mesh_head_forward.6} parent=0 // pred_check
    _
  $region15: #{vox_mesh_head_forward.6} parent=0 // pred_check_branch
    %157 = sbr.rel (0) target = $region17
  $region16: #{vox_mesh_head_forward.6} parent=0 // pred_region
    _
  $region17: #{vox_mesh_head_forward.6} parent=0 // pred_fallthru
    _
  // Predicated region
  $region18: #{vox_mesh_head_forward.6} parent=0 // pred_check
    _
  $region19: #{vox_mesh_head_forward.6} parent=0 // pred_check_branch
    %159 = sbr.rel (0) target = $region21
  $region20: #{vox_mesh_head_forward.6} parent=0 // pred_region
    _
  $region21: #{vox_mesh_head_forward.6} parent=0 // pred_fallthru
    _

// kernel: vox_mesh_head_forward.5
$region0: #{vox_mesh_head_forward.5}
  #allocation0 [shape = 'u32[]', space=smem, size = 0x4, offset = 0x4, fixed_abs, tag = 'smem constant byte address 0x4 - core index']
  #allocation1 [shape = 'u32[144,128]{1,0:T(1,128)}', space=vmem, size = 0x12000, scoped, tag = 'internal scratch']
  %s0 = inlined_call_operand.vmem [shape: bf16[128,32], index: 0, kind: input, shape index: {}]
  %s1 = inlined_call_operand.vmem [shape: bf16[32,128], index: 1, kind: input, shape index: {}]
  %s2 = inlined_call_operand.vmem [shape: f32[1,128], index: 2, kind: input, shape index: {}]
  %s3 = inlined_call_operand.vmem [shape: bf16[128,128], index: 3, kind: output, shape index: {}]
  %s4 = sld [smem:[#allocation0]]
  $region22: #{vox_mesh_head_forward.5} parent=0
    _
  %s6 = ssub.s32 1, %s4
  %s7 = scalar_select 0, %s6, %s4
  // Predicated region
  $region2: #{vox_mesh_head_forward.5} parent=0 // pred_check
    _
  $region3: #{vox_mesh_head_forward.5} parent=0 // pred_check_branch
    %9 = sbr.rel (0) target = $region5
  $region4: #{vox_mesh_head_forward.5} parent=0 // pred_region
    _
  $region5: #{vox_mesh_head_forward.5} parent=0 // pred_fallthru
    _
  // Predicated region
  $region6: #{vox_mesh_head_forward.5} parent=0 // pred_check
    _
  $region7: #{vox_mesh_head_forward.5} parent=0 // pred_check_branch
    %11 = sbr.rel (0) target = $region9
  $region8: #{vox_mesh_head_forward.5} parent=0 // pred_region
    _
  $region9: #{vox_mesh_head_forward.5} parent=0 // pred_fallthru
    _
  // Predicated region
  $region10: #{vox_mesh_head_forward.5} parent=0 // pred_check
    _
  $region11: #{vox_mesh_head_forward.5} parent=0 // pred_check_branch
    %13 = sbr.rel (0) target = $region13
  $region12: #{vox_mesh_head_forward.5} parent=0 // pred_region
    _
  $region13: #{vox_mesh_head_forward.5} parent=0 // pred_fallthru
    _
  %v15 = vld [vmem:[%s0] sm:$0xf]
  %v16 = vld [vmem:[%s0 + $0x4] sm:$0xf]
  %v17 = vld [vmem:[%s0 + $0x8] sm:$0xf]
  %v18 = vld [vmem:[%s0 + $0xc] sm:$0xf]
  %v19 = vld [vmem:[%s0 + $0x10] sm:$0xf]
  %v20 = vld [vmem:[%s0 + $0x14] sm:$0xf]
  %v21 = vld [vmem:[%s0 + $0x18] sm:$0xf]
  %v22 = vld [vmem:[%s0 + $0x1c] sm:$0xf]
  %v23 = vld [vmem:[%s0 + $0x20] sm:$0xf]
  %v24 = vld [vmem:[%s0 + $0x24] sm:$0xf]
  %v25 = vld [vmem:[%s0 + $0x28] sm:$0xf]
  %v26 = vld [vmem:[%s0 + $0x2c] sm:$0xf]
  %v27 = vld [vmem:[%s0 + $0x30] sm:$0xf]
  %v28 = vld [vmem:[%s0 + $0x34] sm:$0xf]
  %v29 = vld [vmem:[%s0 + $0x38] sm:$0xf]
  %v30 = vld [vmem:[%s0 + $0x3c] sm:$0xf]
  %v31 = vld [vmem:[%s1] sm:$0xf]
  %v32 = vld [vmem:[%s1 + $0x4] sm:$0xf]
  %v33 = vld [vmem:[%s1 + $0x8] sm:$0xf]
  %v34 = vld [vmem:[%s1 + $0xc] sm:$0xf]
  %v35 = vld [vmem:[%s2] sm:$0x1]
  %v37 = vlaneseq
  %v38 = vshrl.u32 %v37, 7
  %v39 = vsub.s32 0, %v38
  %v40 = vrot.slane %v35, %v39
  %v58 = vunpack.c.l.b16 %v15
  %v59 = vunpack.c.l.b16 %v16
  %v60 = vunpack.c.l.b16 %v17
  %v61 = vunpack.c.l.b16 %v18
  %v62 = vunpack.c.l.b16 %v19
  %v63 = vunpack.c.l.b16 %v20
  %v64 = vunpack.c.l.b16 %v21
  %v65 = vunpack.c.l.b16 %v22
  %v66 = vunpack.c.l.b16 %v23
  %v67 = vunpack.c.l.b16 %v24
  %v68 = vunpack.c.l.b16 %v25
  %v69 = vunpack.c.l.b16 %v26
  %v70 = vunpack.c.l.b16 %v27
  %v71 = vunpack.c.l.b16 %v28
  %v72 = vunpack.c.l.b16 %v29
  %v73 = vunpack.c.l.b16 %v30
  %v74 = vpack.c.b16 %v59, %v58
  %v75 = vpack.c.b16 %v61, %v60
  %v76 = vpack.c.b16 %v63, %v62
  %v77 = vpack.c.b16 %v65, %v64
  %v78 = vpack.c.b16 %v67, %v66
  %v79 = vpack.c.b16 %v69, %v68
  %v80 = vpack.c.b16 %v71, %v70
  %v81 = vpack.c.b16 %v73, %v72
  %v86 = vunpack.c.l.b16 %v31
  %v87 = vunpack.c.l.b16 %v32
  %v88 = vunpack.c.l.b16 %v33
  %v89 = vunpack.c.l.b16 %v34
  %v90 = vpack.c.b16 %v87, %v86
  %v91 = vpack.c.b16 %v89, %v88
  %vm94 = vcmask 261120
  %v96 = vsel %vm94, %v74, 0
  %v99 = vsel %vm94, %v75, 0
  %v102 = vsel %vm94, %v76, 0
  %v105 = vsel %vm94, %v77, 0
  %v108 = vsel %vm94, %v78, 0
  %v111 = vsel %vm94, %v79, 0
  %v114 = vsel %vm94, %v80, 0
  %v117 = vsel %vm94, %v81, 0
  %119 = vmatprep.subr.bf16.mxu0 0
  %120 = vmatpush1.bf16.msra.mxu0 %v90
  %121 = vmatprep.subr.bf16.mxu0 0
  %122 = vmatpush1.bf16.msra.mxu0 %v91
  %123 = vmatprep.subr.bf16.mxu0 0
  %124 = vmatpush1.bf16.msra.mxu0 0
  %125 = vmatprep.subr.bf16.mxu0 0
  %126 = vmatpush1.bf16.msra.mxu0 0
  %127 = vmatprep.subr.bf16.mxu0 0
  %128 = vmatpush1.bf16.msra.mxu0 0
  %129 = vmatprep.subr.bf16.mxu0 0
  %130 = vmatpush1.bf16.msra.mxu0 0
  %131 = vmatprep.subr.bf16.mxu0 0
  %132 = vmatpush1.bf16.msra.mxu0 0
  %133 = vmatprep.subr.bf16.mxu0 0
  %134 = vmatpush1.bf16.msra.mxu0 0
  %135 = vmatprep.subr.bf16.mxu0 0
  %136 = vmatpush1.bf16.msra.mxu0 0
  %137 = vmatprep.subr.bf16.mxu0 0
  %138 = vmatpush1.bf16.msra.mxu0 0
  %139 = vmatprep.subr.bf16.mxu0 0
  %140 = vmatpush1.bf16.msra.mxu0 0
  %141 = vmatprep.subr.bf16.mxu0 0
  %142 = vmatpush1.bf16.msra.mxu0 0
  %143 = vmatprep.subr.bf16.mxu0 0
  %144 = vmatpush1.bf16.msra.mxu0 0
  %145 = vmatprep.subr.bf16.mxu0 0
  %146 = vmatpush1.bf16.msra.mxu0 0
  %147 = vmatprep.subr.bf16.mxu0 0
  %148 = vmatpush1.bf16.msra.mxu0 0
  %149 = vmatprep.subr.bf16.mxu0 0
  %150 = vmatpush1.bf16.msra.mxu0 0
  %151 = vmatprep.mubr.bf16.mxu0 0
  %152 = vmatmul.mubr.bf16.gmra.mrb[0].mxu0 %v96
  %v153 = vpop.f32.mrb[0].mxu0
  %v154 = vadd.f32 %v40, %v153
  %v155 = vpop.f32.mrb[0].mxu0
  %v156 = vpop.f32.mrb[0].mxu0
  %v157 = vadd.f32 %v40, %v156
  %v158 = vpop.f32.mrb[0].mxu0
  %159 = vmatprep.mubr.bf16.mxu0 0
  %160 = vmatmul.mubr.bf16.gmra.mrb[0].mxu0 %v99
  %v161 = vpop.f32.mrb[0].mxu0
  %v162 = vadd.f32 %v40, %v161
  %v163 = vpop.f32.mrb[0].mxu0
  %v164 = vpop.f32.mrb[0].mxu0
  %v165 = vadd.f32 %v40, %v164
  %v166 = vpop.f32.mrb[0].mxu0
  %167 = vmatprep.mubr.bf16.mxu0 0
  %168 = vmatmul.mubr.bf16.gmra.mrb[0].mxu0 %v102
  %v169 = vpop.f32.mrb[0].mxu0
  %v170 = vadd.f32 %v40, %v169
  %v171 = vpop.f32.mrb[0].mxu0
  %v172 = vpop.f32.mrb[0].mxu0
  %v173 = vadd.f32 %v40, %v172
  %v174 = vpop.f32.mrb[0].mxu0
  %175 = vmatprep.mubr.bf16.mxu0 0
  %176 = vmatmul.mubr.bf16.gmra.mrb[0].mxu0 %v105
  %v177 = vpop.f32.mrb[0].mxu0
  %v178 = vadd.f32 %v40, %v177
  %v179 = vpop.f32.mrb[0].mxu0
  %v180 = vpop.f32.mrb[0].mxu0
  %v181 = vadd.f32 %v40, %v180
  %v182 = vpop.f32.mrb[0].mxu0
  %183 = vmatprep.mubr.bf16.mxu0 0
  %184 = vmatmul.mubr.bf16.gmra.mrb[0].mxu0 %v108
  %v185 = vpop.f32.mrb[0].mxu0
  %v186 = vadd.f32 %v40, %v185
  %v187 = vpop.f32.mrb[0].mxu0
  %v188 = vpop.f32.mrb[0].mxu0
  %v189 = vadd.f32 %v40, %v188
  %v190 = vpop.f32.mrb[0].mxu0
  %191 = vmatprep.mubr.bf16.mxu0 0
  %192 = vmatmul.mubr.bf16.gmra.mrb[0].mxu0 %v111
  %v193 = vpop.f32.mrb[0].mxu0
  %v194 = vadd.f32 %v40, %v193
  %v195 = vpop.f32.mrb[0].mxu0
  %v196 = vpop.f32.mrb[0].mxu0
  %v197 = vadd.f32 %v40, %v196
  %v198 = vpop.f32.mrb[0].mxu0
  %199 = vmatprep.mubr.bf16.mxu0 0
  %200 = vmatmul.mubr.bf16.gmra.mrb[0].mxu0 %v114
  %v201 = vpop.f32.mrb[0].mxu0
  %v202 = vadd.f32 %v40, %v201
  %v203 = vpop.f32.mrb[0].mxu0
  %v204 = vpop.f32.mrb[0].mxu0
  %v205 = vadd.f32 %v40, %v204
  %v206 = vpop.f32.mrb[0].mxu0
  %207 = vmatprep.mubr.bf16.mxu0 0
  %208 = vmatmul.mubr.bf16.gmra.mrb[0].mxu0 %v117
  %v209 = vpop.f32.mrb[0].mxu0
  %v210 = vadd.f32 %v40, %v209
  %v211 = vpop.f32.mrb[0].mxu0
  %v212 = vpop.f32.mrb[0].mxu0
  %v213 = vadd.f32 %v40, %v212
  %v214 = vpop.f32.mrb[0].mxu0
  %215 = vdwg.mxu0
  %v216 = vmax.f32 %v154, 0.0
  %v217 = vmax.f32 %v157, 0.0
  %v218 = vmax.f32 %v162, 0.0
  %v219 = vmax.f32 %v165, 0.0
  %v220 = vmax.f32 %v170, 0.0
  %v221 = vmax.f32 %v173, 0.0
  %v222 = vmax.f32 %v178, 0.0
  %v223 = vmax.f32 %v181, 0.0
  %v224 = vmax.f32 %v186, 0.0
  %v225 = vmax.f32 %v189, 0.0
  %v226 = vmax.f32 %v194, 0.0
  %v227 = vmax.f32 %v197, 0.0
  %v228 = vmax.f32 %v202, 0.0
  %v229 = vmax.f32 %v205, 0.0
  %v230 = vmax.f32 %v210, 0.0
  %v231 = vmax.f32 %v213, 0.0
  %v232 = vpack.c.bf16 %v217, %v216
  %v233 = vpack.c.bf16 %v219, %v218
  %v234 = vpack.c.bf16 %v221, %v220
  %v235 = vpack.c.bf16 %v223, %v222
  %v236 = vpack.c.bf16 %v225, %v224
  %v237 = vpack.c.bf16 %v227, %v226
  %v238 = vpack.c.bf16 %v229, %v228
  %v239 = vpack.c.bf16 %v231, %v230
  %v248 = vunpack.c.l.b16 %v232
  %v249 = vunpack.c.h.b16 %v232
  %v250 = vunpack.c.l.b16 %v233
  %v251 = vunpack.c.h.b16 %v233
  %v252 = vunpack.c.l.b16 %v234
  %v253 = vunpack.c.h.b16 %v234
  %v254 = vunpack.c.l.b16 %v235
  %v255 = vunpack.c.h.b16 %v235
  %v256 = vunpack.c.l.b16 %v236
  %v257 = vunpack.c.h.b16 %v236
  %v258 = vunpack.c.l.b16 %v237
  %v259 = vunpack.c.h.b16 %v237
  %v260 = vunpack.c.l.b16 %v238
  %v261 = vunpack.c.h.b16 %v238
  %v262 = vunpack.c.l.b16 %v239
  %v263 = vunpack.c.h.b16 %v239
  %v264 = vpack.c.b16 %v248, %v248
  %v265 = vpack.c.b16 %v249, %v249
  %v266 = vpack.c.b16 %v250, %v250
  %v267 = vpack.c.b16 %v251, %v251
  %v268 = vpack.c.b16 %v252, %v252
  %v269 = vpack.c.b16 %v253, %v253
  %v270 = vpack.c.b16 %v254, %v254
  %v271 = vpack.c.b16 %v255, %v255
  %v272 = vpack.c.b16 %v256, %v256
  %v273 = vpack.c.b16 %v257, %v257
  %v274 = vpack.c.b16 %v258, %v258
  %v275 = vpack.c.b16 %v259, %v259
  %v276 = vpack.c.b16 %v260, %v260
  %v277 = vpack.c.b16 %v261, %v261
  %v278 = vpack.c.b16 %v262, %v262
  %v279 = vpack.c.b16 %v263, %v263
  %296 = vst [vmem:[%s3] sm:$0xf] %v264
  %297 = vst [vmem:[%s3 + $0x4] sm:$0xf] %v265
  %298 = vst [vmem:[%s3 + $0x8] sm:$0xf] %v266
  %299 = vst [vmem:[%s3 + $0xc] sm:$0xf] %v267
  %300 = vst [vmem:[%s3 + $0x10] sm:$0xf] %v268
  %301 = vst [vmem:[%s3 + $0x14] sm:$0xf] %v269
  %302 = vst [vmem:[%s3 + $0x18] sm:$0xf] %v270
  %303 = vst [vmem:[%s3 + $0x1c] sm:$0xf] %v271
  %304 = vst [vmem:[%s3 + $0x20] sm:$0xf] %v272
  %305 = vst [vmem:[%s3 + $0x24] sm:$0xf] %v273
  %306 = vst [vmem:[%s3 + $0x28] sm:$0xf] %v274
  %307 = vst [vmem:[%s3 + $0x2c] sm:$0xf] %v275
  %308 = vst [vmem:[%s3 + $0x30] sm:$0xf] %v276
  %309 = vst [vmem:[%s3 + $0x34] sm:$0xf] %v277
  %310 = vst [vmem:[%s3 + $0x38] sm:$0xf] %v278
  %311 = vst [vmem:[%s3 + $0x3c] sm:$0xf] %v279
  // Predicated region
  $region14: #{vox_mesh_head_forward.5} parent=0 // pred_check
    _
  $region15: #{vox_mesh_head_forward.5} parent=0 // pred_check_branch
    %313 = sbr.rel (0) target = $region17
  $region16: #{vox_mesh_head_forward.5} parent=0 // pred_region
    _
  $region17: #{vox_mesh_head_forward.5} parent=0 // pred_fallthru
    _
  // Predicated region
  $region18: #{vox_mesh_head_forward.5} parent=0 // pred_check
    _
  $region19: #{vox_mesh_head_forward.5} parent=0 // pred_check_branch
    %315 = sbr.rel (0) target = $region21
  $region20: #{vox_mesh_head_forward.5} parent=0 // pred_region
    _
  $region21: #{vox_mesh_head_forward.5} parent=0 // pred_fallthru
    _

// kernel: vox_mesh_head_forward.7
$region0: #{vox_mesh_head_forward.7}
  #allocation0 [shape = 'u32[]', space=smem, size = 0x4, offset = 0x4, fixed_abs, tag = 'smem constant byte address 0x4 - core index']
  #allocation1 [shape = 'u32[144,128]{1,0:T(1,128)}', space=vmem, size = 0x12000, scoped, tag = 'internal scratch']
  %s0 = inlined_call_operand.vmem [shape: bf16[8,144], index: 0, kind: input, shape index: {}]
  %s1 = inlined_call_operand.vmem [shape: bf16[144,128], index: 1, kind: input, shape index: {}]
  %s2 = inlined_call_operand.vmem [shape: f32[1,128], index: 2, kind: input, shape index: {}]
  %s3 = inlined_call_operand.vmem [shape: bf16[8,128], index: 3, kind: output, shape index: {}]
  %s4 = sld [smem:[#allocation0]]
  $region22: #{vox_mesh_head_forward.7} parent=0
    _
  %s6 = ssub.s32 1, %s4
  %s7 = scalar_select 0, %s6, %s4
  // Predicated region
  $region2: #{vox_mesh_head_forward.7} parent=0 // pred_check
    _
  $region3: #{vox_mesh_head_forward.7} parent=0 // pred_check_branch
    %9 = sbr.rel (0) target = $region5
  $region4: #{vox_mesh_head_forward.7} parent=0 // pred_region
    _
  $region5: #{vox_mesh_head_forward.7} parent=0 // pred_fallthru
    _
  // Predicated region
  $region6: #{vox_mesh_head_forward.7} parent=0 // pred_check
    _
  $region7: #{vox_mesh_head_forward.7} parent=0 // pred_check_branch
    %11 = sbr.rel (0) target = $region9
  $region8: #{vox_mesh_head_forward.7} parent=0 // pred_region
    _
  $region9: #{vox_mesh_head_forward.7} parent=0 // pred_fallthru
    _
  // Predicated region
  $region10: #{vox_mesh_head_forward.7} parent=0 // pred_check
    _
  $region11: #{vox_mesh_head_forward.7} parent=0 // pred_check_branch
    %13 = sbr.rel (0) target = $region13
  $region12: #{vox_mesh_head_forward.7} parent=0 // pred_region
    _
  $region13: #{vox_mesh_head_forward.7} parent=0 // pred_fallthru
    _
  %v15 = vld [vmem:[%s0] sm:$0xff]
  %v16 = vld [vmem:[%s1] sm:$0xf]
  %v17 = vld [vmem:[%s1 + $0x4] sm:$0xf]
  %v18 = vld [vmem:[%s1 + $0x8] sm:$0xf]
  %v19 = vld [vmem:[%s1 + $0xc] sm:$0xf]
  %v20 = vld [vmem:[%s1 + $0x10] sm:$0xf]
  %v21 = vld [vmem:[%s1 + $0x14] sm:$0xf]
  %v22 = vld [vmem:[%s1 + $0x18] sm:$0xf]
  %v23 = vld [vmem:[%s1 + $0x1c] sm:$0xf]
  %v24 = vld [vmem:[%s1 + $0x20] sm:$0xf]
  %v25 = vld [vmem:[%s1 + $0x24] sm:$0xf]
  %v26 = vld [vmem:[%s1 + $0x28] sm:$0xf]
  %v27 = vld [vmem:[%s1 + $0x2c] sm:$0xf]
  %v28 = vld [vmem:[%s1 + $0x30] sm:$0xf]
  %v29 = vld [vmem:[%s1 + $0x34] sm:$0xf]
  %v30 = vld [vmem:[%s1 + $0x38] sm:$0xf]
  %v31 = vld [vmem:[%s1 + $0x3c] sm:$0xf]
  %v32 = vld [vmem:[%s1 + $0x40] sm:$0xf]
  %v33 = vld [vmem:[%s1 + $0x44] sm:$0xf]
  %v34 = vld [vmem:[%s2] sm:$0x1]
  %v36 = vlaneseq
  %v37 = vshrl.u32 %v36, 7
  %v38 = vsub.s32 0, %v37
  %v39 = vrot.slane %v34, %v38
  %v42 = vunpack.c.l.b16 %v15
  %v43 = vunpack.c.h.b16 %v15
  %v44 = vpack.c.b16 %v42, %v42
  %v45 = vpack.c.b16 %v43, %v43
  %v65 = vunpack.c.l.b16 %v16
  %v66 = vunpack.c.l.b16 %v17
  %v67 = vunpack.c.l.b16 %v18
  %v68 = vunpack.c.l.b16 %v19
  %v69 = vunpack.c.l.b16 %v20
  %v70 = vunpack.c.l.b16 %v21
  %v71 = vunpack.c.l.b16 %v22
  %v72 = vunpack.c.l.b16 %v23
  %v73 = vunpack.c.l.b16 %v24
  %v74 = vunpack.c.l.b16 %v25
  %v75 = vunpack.c.l.b16 %v26
  %v76 = vunpack.c.l.b16 %v27
  %v77 = vunpack.c.l.b16 %v28
  %v78 = vunpack.c.l.b16 %v29
  %v79 = vunpack.c.l.b16 %v30
  %v80 = vunpack.c.l.b16 %v31
  %v81 = vunpack.c.l.b16 %v32
  %v82 = vunpack.c.l.b16 %v33
  %v83 = vpack.c.b16 %v66, %v65
  %v84 = vpack.c.b16 %v68, %v67
  %v85 = vpack.c.b16 %v70, %v69
  %v86 = vpack.c.b16 %v72, %v71
  %v87 = vpack.c.b16 %v74, %v73
  %v88 = vpack.c.b16 %v76, %v75
  %v89 = vpack.c.b16 %v78, %v77
  %v90 = vpack.c.b16 %v80, %v79
  %v91 = vpack.c.b16 %v82, %v81
  %vm101 = vcmask 130048
  %v103 = vsel %vm101, %v45, 0
  %105 = vmatprep.subr.bf16.mxu0 0
  %106 = vmatpush1.bf16.msra.mxu0 %v83
  %107 = vmatprep.subr.bf16.mxu0 0
  %108 = vmatpush1.bf16.msra.mxu0 %v84
  %109 = vmatprep.subr.bf16.mxu0 0
  %110 = vmatpush1.bf16.msra.mxu0 %v85
  %111 = vmatprep.subr.bf16.mxu0 0
  %112 = vmatpush1.bf16.msra.mxu0 %v86
  %113 = vmatprep.subr.bf16.mxu0 0
  %114 = vmatpush1.bf16.msra.mxu0 %v87
  %115 = vmatprep.subr.bf16.mxu0 0
  %116 = vmatpush1.bf16.msra.mxu0 %v88
  %117 = vmatprep.subr.bf16.mxu0 0
  %118 = vmatpush1.bf16.msra.mxu0 %v89
  %119 = vmatprep.subr.bf16.mxu0 0
  %120 = vmatpush1.bf16.msra.mxu0 %v90
  %121 = vmatprep.subr.bf16.mxu0 0
  %122 = vmatpush1.bf16.msra.mxu0 %v91
  %123 = vmatprep.subr.bf16.mxu0 0
  %124 = vmatpush1.bf16.msra.mxu0 0
  %125 = vmatprep.subr.bf16.mxu0 0
  %126 = vmatpush1.bf16.msra.mxu0 0
  %127 = vmatprep.subr.bf16.mxu0 0
  %128 = vmatpush1.bf16.msra.mxu0 0
  %129 = vmatprep.subr.bf16.mxu0 0
  %130 = vmatpush1.bf16.msra.mxu0 0
  %131 = vmatprep.subr.bf16.mxu0 0
  %132 = vmatpush1.bf16.msra.mxu0 0
  %133 = vmatprep.subr.bf16.mxu0 0
  %134 = vmatpush1.bf16.msra.mxu0 0
  %135 = vmatprep.subr.bf16.mxu0 0
  %136 = vmatpush1.bf16.msra.mxu0 0
  %137 = vmatprep.mubr.bf16.mxu0 %v103
  %138 = vmatmul.mubr.bf16.gmra.mrb[0].mxu0 %v44
  %v139 = vpop.f32.mrb[0].mxu0
  %v140 = vadd.f32 %v39, %v139
  %v141 = vpop.f32.mrb[0].mxu0
  %v142 = vpop.f32.mrb[0].mxu0
  %v143 = vpop.f32.mrb[0].mxu0
  %144 = vdwg.mxu0
  %v145 = vmax.f32 %v140, 0.0
  %v146 = vpack.c.bf16 %v145, %v145
  %147 = vst [vmem:[%s3] sm:$0xf] %v146
  // Predicated region
  $region14: #{vox_mesh_head_forward.7} parent=0 // pred_check
    _
  $region15: #{vox_mesh_head_forward.7} parent=0 // pred_check_branch
    %149 = sbr.rel (0) target = $region17
  $region16: #{vox_mesh_head_forward.7} parent=0 // pred_region
    _
  $region17: #{vox_mesh_head_forward.7} parent=0 // pred_fallthru
    _
  // Predicated region
  $region18: #{vox_mesh_head_forward.7} parent=0 // pred_check
    _
  $region19: #{vox_mesh_head_forward.7} parent=0 // pred_check_branch
    %151 = sbr.rel (0) target = $region21
  $region20: #{vox_mesh_head_forward.7} parent=0 // pred_region
    _
  $region21: #{vox_mesh_head_forward.7} parent=0 // pred_fallthru
    _

// kernel: vox_mesh_head_forward.8
$region0: #{vox_mesh_head_forward.8}
  #allocation0 [shape = 'u32[]', space=smem, size = 0x4, offset = 0x4, fixed_abs, tag = 'smem constant byte address 0x4 - core index']
  #allocation1 [shape = 'u32[144,128]{1,0:T(1,128)}', space=vmem, size = 0x12000, scoped, tag = 'internal scratch']
  %s0 = inlined_call_operand.vmem [shape: bf16[8,288], index: 0, kind: input, shape index: {}]
  %s1 = inlined_call_operand.vmem [shape: bf16[288,32], index: 1, kind: input, shape index: {}]
  %s2 = inlined_call_operand.vmem [shape: f32[1,32], index: 2, kind: input, shape index: {}]
  %s3 = inlined_call_operand.vmem [shape: bf16[32,128], index: 3, kind: input, shape index: {}]
  %s4 = inlined_call_operand.vmem [shape: f32[1,128], index: 4, kind: input, shape index: {}]
  %s5 = inlined_call_operand.vmem [shape: f32[8,128], index: 5, kind: output, shape index: {}]
  %s6 = sld [smem:[#allocation0]]
  $region30: #{vox_mesh_head_forward.8} parent=0
    _
  %s8 = ssub.s32 1, %s6
  %s9 = scalar_select 0, %s8, %s6
  // Predicated region
  $region2: #{vox_mesh_head_forward.8} parent=0 // pred_check
    _
  $region3: #{vox_mesh_head_forward.8} parent=0 // pred_check_branch
    %11 = sbr.rel (0) target = $region5
  $region4: #{vox_mesh_head_forward.8} parent=0 // pred_region
    _
  $region5: #{vox_mesh_head_forward.8} parent=0 // pred_fallthru
    _
  // Predicated region
  $region6: #{vox_mesh_head_forward.8} parent=0 // pred_check
    _
  $region7: #{vox_mesh_head_forward.8} parent=0 // pred_check_branch
    %13 = sbr.rel (0) target = $region9
  $region8: #{vox_mesh_head_forward.8} parent=0 // pred_region
    _
  $region9: #{vox_mesh_head_forward.8} parent=0 // pred_fallthru
    _
  // Predicated region
  $region10: #{vox_mesh_head_forward.8} parent=0 // pred_check
    _
  $region11: #{vox_mesh_head_forward.8} parent=0 // pred_check_branch
    %15 = sbr.rel (0) target = $region13
  $region12: #{vox_mesh_head_forward.8} parent=0 // pred_region
    _
  $region13: #{vox_mesh_head_forward.8} parent=0 // pred_fallthru
    _
  // Predicated region
  $region14: #{vox_mesh_head_forward.8} parent=0 // pred_check
    _
  $region15: #{vox_mesh_head_forward.8} parent=0 // pred_check_branch
    %17 = sbr.rel (0) target = $region17
  $region16: #{vox_mesh_head_forward.8} parent=0 // pred_region
    _
  $region17: #{vox_mesh_head_forward.8} parent=0 // pred_fallthru
    _
  // Predicated region
  $region18: #{vox_mesh_head_forward.8} parent=0 // pred_check
    _
  $region19: #{vox_mesh_head_forward.8} parent=0 // pred_check_branch
    %19 = sbr.rel (0) target = $region21
  $region20: #{vox_mesh_head_forward.8} parent=0 // pred_region
    _
  $region21: #{vox_mesh_head_forward.8} parent=0 // pred_fallthru
    _
  %v21 = vld [vmem:[%s0] sm:$0xff]
  %v22 = vld [vmem:[%s0 + $0x8] sm:$0xf]
  %v23 = vld [vmem:[%s1] sm:$0xf]
  %v24 = vld [vmem:[%s1 + $0x4] sm:$0xf]
  %v25 = vld [vmem:[%s1 + $0x8] sm:$0xf]
  %v26 = vld [vmem:[%s1 + $0xc] sm:$0xf]
  %v27 = vld [vmem:[%s1 + $0x10] sm:$0xf]
  %v28 = vld [vmem:[%s1 + $0x14] sm:$0xf]
  %v29 = vld [vmem:[%s1 + $0x18] sm:$0xf]
  %v30 = vld [vmem:[%s1 + $0x1c] sm:$0xf]
  %v31 = vld [vmem:[%s1 + $0x20] sm:$0xf]
  %v32 = vld [vmem:[%s1 + $0x24] sm:$0xf]
  %v33 = vld [vmem:[%s1 + $0x28] sm:$0xf]
  %v34 = vld [vmem:[%s1 + $0x2c] sm:$0xf]
  %v35 = vld [vmem:[%s1 + $0x30] sm:$0xf]
  %v36 = vld [vmem:[%s1 + $0x34] sm:$0xf]
  %v37 = vld [vmem:[%s1 + $0x38] sm:$0xf]
  %v38 = vld [vmem:[%s1 + $0x3c] sm:$0xf]
  %v39 = vld [vmem:[%s1 + $0x40] sm:$0xf]
  %v40 = vld [vmem:[%s1 + $0x44] sm:$0xf]
  %v41 = vld [vmem:[%s1 + $0x48] sm:$0xf]
  %v42 = vld [vmem:[%s1 + $0x4c] sm:$0xf]
  %v43 = vld [vmem:[%s1 + $0x50] sm:$0xf]
  %v44 = vld [vmem:[%s1 + $0x54] sm:$0xf]
  %v45 = vld [vmem:[%s1 + $0x58] sm:$0xf]
  %v46 = vld [vmem:[%s1 + $0x5c] sm:$0xf]
  %v47 = vld [vmem:[%s1 + $0x60] sm:$0xf]
  %v48 = vld [vmem:[%s1 + $0x64] sm:$0xf]
  %v49 = vld [vmem:[%s1 + $0x68] sm:$0xf]
  %v50 = vld [vmem:[%s1 + $0x6c] sm:$0xf]
  %v51 = vld [vmem:[%s1 + $0x70] sm:$0xf]
  %v52 = vld [vmem:[%s1 + $0x74] sm:$0xf]
  %v53 = vld [vmem:[%s1 + $0x78] sm:$0xf]
  %v54 = vld [vmem:[%s1 + $0x7c] sm:$0xf]
  %v55 = vld [vmem:[%s1 + $0x80] sm:$0xf]
  %v56 = vld [vmem:[%s1 + $0x84] sm:$0xf]
  %v57 = vld [vmem:[%s1 + $0x88] sm:$0xf]
  %v58 = vld [vmem:[%s1 + $0x8c] sm:$0xf]
  %v59 = vld [vmem:[%s2] sm:$0x1]
  %v61 = vlaneseq
  %v62 = vshrl.u32 %v61, 7
  %v63 = vsub.s32 0, %v62
  %v64 = vrot.slane %v59, %v63
  %v68 = vunpack.c.l.b16 %v21
  %v69 = vunpack.c.h.b16 %v21
  %v70 = vunpack.c.l.b16 %v22
  %v71 = vpack.c.b16 %v68, %v68
  %v72 = vpack.c.b16 %v69, %v69
  %v73 = vpack.c.b16 %v70, %v70
  %v112 = vunpack.c.l.b16 %v23
  %v113 = vunpack.c.l.b16 %v24
  %v114 = vunpack.c.l.b16 %v25
  %v115 = vunpack.c.l.b16 %v26
  %v116 = vunpack.c.l.b16 %v27
  %v117 = vunpack.c.l.b16 %v28
  %v118 = vunpack.c.l.b16 %v29
  %v119 = vunpack.c.l.b16 %v30
  %v120 = vunpack.c.l.b16 %v31
  %v121 = vunpack.c.l.b16 %v32
  %v122 = vunpack.c.l.b16 %v33
  %v123 = vunpack.c.l.b16 %v34
  %v124 = vunpack.c.l.b16 %v35
  %v125 = vunpack.c.l.b16 %v36
  %v126 = vunpack.c.l.b16 %v37
  %v127 = vunpack.c.l.b16 %v38
  %v128 = vunpack.c.l.b16 %v39
  %v129 = vunpack.c.l.b16 %v40
  %v130 = vunpack.c.l.b16 %v41
  %v131 = vunpack.c.l.b16 %v42
  %v132 = vunpack.c.l.b16 %v43
  %v133 = vunpack.c.l.b16 %v44
  %v134 = vunpack.c.l.b16 %v45
  %v135 = vunpack.c.l.b16 %v46
  %v136 = vunpack.c.l.b16 %v47
  %v137 = vunpack.c.l.b16 %v48
  %v138 = vunpack.c.l.b16 %v49
  %v139 = vunpack.c.l.b16 %v50
  %v140 = vunpack.c.l.b16 %v51
  %v141 = vunpack.c.l.b16 %v52
  %v142 = vunpack.c.l.b16 %v53
  %v143 = vunpack.c.l.b16 %v54
  %v144 = vunpack.c.l.b16 %v55
  %v145 = vunpack.c.l.b16 %v56
  %v146 = vunpack.c.l.b16 %v57
  %v147 = vunpack.c.l.b16 %v58
  %v148 = vpack.c.b16 %v113, %v112
  %v149 = vpack.c.b16 %v115, %v114
  %v150 = vpack.c.b16 %v117, %v116
  %v151 = vpack.c.b16 %v119, %v118
  %v152 = vpack.c.b16 %v121, %v120
  %v153 = vpack.c.b16 %v123, %v122
  %v154 = vpack.c.b16 %v125, %v124
  %v155 = vpack.c.b16 %v127, %v126
  %v156 = vpack.c.b16 %v129, %v128
  %v157 = vpack.c.b16 %v131, %v130
  %v158 = vpack.c.b16 %v133, %v132
  %v159 = vpack.c.b16 %v135, %v134
  %v160 = vpack.c.b16 %v137, %v136
  %v161 = vpack.c.b16 %v139, %v138
  %v162 = vpack.c.b16 %v141, %v140
  %v163 = vpack.c.b16 %v143, %v142
  %v164 = vpack.c.b16 %v145, %v144
  %v165 = vpack.c.b16 %v147, %v146
  %vm184 = vcmask 261120
  %v186 = vsel %vm184, %v73, 0
  %188 = vmatprep.subr.bf16.mxu0 0
  %189 = vmatpush1.bf16.msra.mxu0 %v148
  %190 = vmatprep.subr.bf16.mxu0 0
  %191 = vmatpush1.bf16.msra.mxu0 %v149
  %192 = vmatprep.subr.bf16.mxu0 0
  %193 = vmatpush1.bf16.msra.mxu0 %v150
  %194 = vmatprep.subr.bf16.mxu0 0
  %195 = vmatpush1.bf16.msra.mxu0 %v151
  %196 = vmatprep.subr.bf16.mxu0 0
  %197 = vmatpush1.bf16.msra.mxu0 %v152
  %198 = vmatprep.subr.bf16.mxu0 0
  %199 = vmatpush1.bf16.msra.mxu0 %v153
  %200 = vmatprep.subr.bf16.mxu0 0
  %201 = vmatpush1.bf16.msra.mxu0 %v154
  %202 = vmatprep.subr.bf16.mxu0 0
  %203 = vmatpush1.bf16.msra.mxu0 %v155
  %204 = vmatprep.subr.bf16.mxu0 0
  %205 = vmatpush1.bf16.msra.mxu0 %v156
  %206 = vmatprep.subr.bf16.mxu0 0
  %207 = vmatpush1.bf16.msra.mxu0 %v157
  %208 = vmatprep.subr.bf16.mxu0 0
  %209 = vmatpush1.bf16.msra.mxu0 %v158
  %210 = vmatprep.subr.bf16.mxu0 0
  %211 = vmatpush1.bf16.msra.mxu0 %v159
  %212 = vmatprep.subr.bf16.mxu0 0
  %213 = vmatpush1.bf16.msra.mxu0 %v160
  %214 = vmatprep.subr.bf16.mxu0 0
  %215 = vmatpush1.bf16.msra.mxu0 %v161
  %216 = vmatprep.subr.bf16.mxu0 0
  %217 = vmatpush1.bf16.msra.mxu0 %v162
  %218 = vmatprep.subr.bf16.mxu0 0
  %219 = vmatpush1.bf16.msra.mxu0 %v163
  %220 = vmatprep.mubr.bf16.mxu0 %v72
  %221 = vmatmul.mubr.bf16.gmra.mrb[0].mxu0 %v71
  %v222 = vpop.f32.mrb[0].mxu0
  %v223 = vadd.f32 %v64, %v222
  %v224 = vpop.f32.mrb[0].mxu0
  %v225 = vpop.f32.mrb[0].mxu0
  %v226 = vpop.f32.mrb[0].mxu0
  %227 = vdwg.mxu0
  %228 = vmatprep.subr.bf16.mxu0 0
  %229 = vmatpush1.bf16.msra.mxu0 %v164
  %230 = vmatprep.subr.bf16.mxu0 0
  %231 = vmatpush1.bf16.msra.mxu0 %v165
  %232 = vmatprep.subr.bf16.mxu0 0
  %233 = vmatpush1.bf16.msra.mxu0 0
  %234 = vmatprep.subr.bf16.mxu0 0
  %235 = vmatpush1.bf16.msra.mxu0 0
  %236 = vmatprep.subr.bf16.mxu0 0
  %237 = vmatpush1.bf16.msra.mxu0 0
  %238 = vmatprep.subr.bf16.mxu0 0
  %239 = vmatpush1.bf16.msra.mxu0 0
  %240 = vmatprep.subr.bf16.mxu0 0
  %241 = vmatpush1.bf16.msra.mxu0 0
  %242 = vmatprep.subr.bf16.mxu0 0
  %243 = vmatpush1.bf16.msra.mxu0 0
  %244 = vmatprep.subr.bf16.mxu0 0
  %245 = vmatpush1.bf16.msra.mxu0 0
  %246 = vmatprep.subr.bf16.mxu0 0
  %247 = vmatpush1.bf16.msra.mxu0 0
  %248 = vmatprep.subr.bf16.mxu0 0
  %249 = vmatpush1.bf16.msra.mxu0 0
  %250 = vmatprep.subr.bf16.mxu0 0
  %251 = vmatpush1.bf16.msra.mxu0 0
  %252 = vmatprep.subr.bf16.mxu0 0
  %253 = vmatpush1.bf16.msra.mxu0 0
  %254 = vmatprep.subr.bf16.mxu0 0
  %255 = vmatpush1.bf16.msra.mxu0 0
  %256 = vmatprep.subr.bf16.mxu0 0
  %257 = vmatpush1.bf16.msra.mxu0 0
  %258 = vmatprep.subr.bf16.mxu0 0
  %259 = vmatpush1.bf16.msra.mxu0 0
  %260 = vmatprep.mubr.bf16.mxu0 0
  %261 = vmatmul.mubr.bf16.gmra.mrb[0].mxu0 %v186
  %v262 = vpop.f32.mrb[0].mxu0
  %v263 = vadd.f32 %v223, %v262
  %v264 = vpop.f32.mrb[0].mxu0
  %v265 = vpop.f32.mrb[0].mxu0
  %v266 = vpop.f32.mrb[0].mxu0
  %267 = vdwg.mxu0
  %v268 = vmax.f32 %v263, 0.0
  %v269 = vpack.c.bf16 %v268, %v268
  %v270 = vld [vmem:[%s3] sm:$0xf]
  %v271 = vld [vmem:[%s3 + $0x4] sm:$0xf]
  %v272 = vld [vmem:[%s3 + $0x8] sm:$0xf]
  %v273 = vld [vmem:[%s3 + $0xc] sm:$0xf]
  %v274 = vld [vmem:[%s4] sm:$0x1]
  %v276 = vlaneseq
  %v277 = vshrl.u32 %v276, 7
  %v278 = vsub.s32 0, %v277
  %v279 = vrot.slane %v274, %v278
  %v285 = vunpack.c.l.b16 %v270
  %v286 = vunpack.c.l.b16 %v271
  %v287 = vunpack.c.l.b16 %v272
  %v288 = vunpack.c.l.b16 %v273
  %v289 = vpack.c.b16 %v286, %v285
  %v290 = vpack.c.b16 %v288, %v287
  %v294 = vsel %vm184, %v269, 0
  %296 = vmatprep.subr.bf16.mxu0 0
  %297 = vmatpush1.bf16.msra.mxu0 %v289
  %298 = vmatprep.subr.bf16.mxu0 0
  %299 = vmatpush1.bf16.msra.mxu0 %v290
  %300 = vmatprep.subr.bf16.mxu0 0
  %301 = vmatpush1.bf16.msra.mxu0 0
  %302 = vmatprep.subr.bf16.mxu0 0
  %303 = vmatpush1.bf16.msra.mxu0 0
  %304 = vmatprep.subr.bf16.mxu0 0
  %305 = vmatpush1.bf16.msra.mxu0 0
  %306 = vmatprep.subr.bf16.mxu0 0
  %307 = vmatpush1.bf16.msra.mxu0 0
  %308 = vmatprep.subr.bf16.mxu0 0
  %309 = vmatpush1.bf16.msra.mxu0 0
  %310 = vmatprep.subr.bf16.mxu0 0
  %311 = vmatpush1.bf16.msra.mxu0 0
  %312 = vmatprep.subr.bf16.mxu0 0
  %313 = vmatpush1.bf16.msra.mxu0 0
  %314 = vmatprep.subr.bf16.mxu0 0
  %315 = vmatpush1.bf16.msra.mxu0 0
  %316 = vmatprep.subr.bf16.mxu0 0
  %317 = vmatpush1.bf16.msra.mxu0 0
  %318 = vmatprep.subr.bf16.mxu0 0
  %319 = vmatpush1.bf16.msra.mxu0 0
  %320 = vmatprep.subr.bf16.mxu0 0
  %321 = vmatpush1.bf16.msra.mxu0 0
  %322 = vmatprep.subr.bf16.mxu0 0
  %323 = vmatpush1.bf16.msra.mxu0 0
  %324 = vmatprep.subr.bf16.mxu0 0
  %325 = vmatpush1.bf16.msra.mxu0 0
  %326 = vmatprep.subr.bf16.mxu0 0
  %327 = vmatpush1.bf16.msra.mxu0 0
  %328 = vmatprep.mubr.bf16.mxu0 0
  %329 = vmatmul.mubr.bf16.gmra.mrb[0].mxu0 %v294
  %v330 = vpop.f32.mrb[0].mxu0
  %v331 = vadd.f32 %v279, %v330
  %v332 = vpop.f32.mrb[0].mxu0
  %v333 = vpop.f32.mrb[0].mxu0
  %v334 = vpop.f32.mrb[0].mxu0
  %335 = vdwg.mxu0
  %336 = vst [vmem:[%s5] sm:$0xff] %v331
  // Predicated region
  $region22: #{vox_mesh_head_forward.8} parent=0 // pred_check
    _
  $region23: #{vox_mesh_head_forward.8} parent=0 // pred_check_branch
    %338 = sbr.rel (0) target = $region25
  $region24: #{vox_mesh_head_forward.8} parent=0 // pred_region
    _
  $region25: #{vox_mesh_head_forward.8} parent=0 // pred_fallthru
    _
  // Predicated region
  $region26: #{vox_mesh_head_forward.8} parent=0 // pred_check
    _
  $region27: #{vox_mesh_head_forward.8} parent=0 // pred_check_branch
    %340 = sbr.rel (0) target = $region29
  $region28: #{vox_mesh_head_forward.8} parent=0 // pred_region
    _
  $region29: #{vox_mesh_head_forward.8} parent=0 // pred_fallthru
    _

// kernel: vox_mesh_head_forward.9
$region0: #{vox_mesh_head_forward.9}
  #allocation0 [shape = 'u32[]', space=smem, size = 0x4, offset = 0x4, fixed_abs, tag = 'smem constant byte address 0x4 - core index']
  #allocation1 [shape = 'u32[144,128]{1,0:T(1,128)}', space=vmem, size = 0x12000, scoped, tag = 'internal scratch']
  %s0 = inlined_call_operand.vmem [shape: bf16[16,64], index: 0, kind: input, shape index: {}]
  %s1 = inlined_call_operand.vmem [shape: bf16[16,8], index: 1, kind: input, shape index: {}]
  %s2 = inlined_call_operand.vmem [shape: bf16[16,16], index: 2, kind: input, shape index: {}]
  %s3 = inlined_call_operand.vmem [shape: f32[16,1], index: 3, kind: input, shape index: {}]
  %s4 = inlined_call_operand.vmem [shape: bf16[64,32], index: 4, kind: input, shape index: {}]
  %s5 = inlined_call_operand.vmem [shape: f32[1,32], index: 5, kind: input, shape index: {}]
  %s6 = inlined_call_operand.vmem [shape: bf16[32,32], index: 6, kind: input, shape index: {}]
  %s7 = inlined_call_operand.vmem [shape: bf16[8,32], index: 7, kind: input, shape index: {}]
  %s8 = inlined_call_operand.vmem [shape: f32[1,32], index: 8, kind: input, shape index: {}]
  %s9 = inlined_call_operand.vmem [shape: bf16[32,32], index: 9, kind: input, shape index: {}]
  %s10 = inlined_call_operand.vmem [shape: bf16[8,32], index: 10, kind: input, shape index: {}]
  %s11 = inlined_call_operand.vmem [shape: f32[1,32], index: 11, kind: input, shape index: {}]
  %s12 = inlined_call_operand.vmem [shape: bf16[32,32], index: 12, kind: input, shape index: {}]
  %s13 = inlined_call_operand.vmem [shape: bf16[8,32], index: 13, kind: input, shape index: {}]
  %s14 = inlined_call_operand.vmem [shape: f32[1,32], index: 14, kind: input, shape index: {}]
  %s15 = inlined_call_operand.vmem [shape: bf16[32,32], index: 15, kind: input, shape index: {}]
  %s16 = inlined_call_operand.vmem [shape: bf16[8,32], index: 16, kind: input, shape index: {}]
  %s17 = inlined_call_operand.vmem [shape: f32[1,32], index: 17, kind: input, shape index: {}]
  %s18 = inlined_call_operand.vmem [shape: bf16[32,128], index: 18, kind: input, shape index: {}]
  %s19 = inlined_call_operand.vmem [shape: bf16[8,128], index: 19, kind: input, shape index: {}]
  %s20 = inlined_call_operand.vmem [shape: f32[1,128], index: 20, kind: input, shape index: {}]
  %s21 = inlined_call_operand.vmem [shape: f32[16,128], index: 21, kind: output, shape index: {}]
  %s22 = sld [smem:[#allocation0]]
  $region94: #{vox_mesh_head_forward.9} parent=0
    _
  %s24 = ssub.s32 1, %s22
  %s25 = scalar_select 0, %s24, %s22
  // Predicated region
  $region2: #{vox_mesh_head_forward.9} parent=0 // pred_check
    _
  $region3: #{vox_mesh_head_forward.9} parent=0 // pred_check_branch
    %27 = sbr.rel (0) target = $region5
  $region4: #{vox_mesh_head_forward.9} parent=0 // pred_region
    _
  $region5: #{vox_mesh_head_forward.9} parent=0 // pred_fallthru
    _
  // Predicated region
  $region6: #{vox_mesh_head_forward.9} parent=0 // pred_check
    _
  $region7: #{vox_mesh_head_forward.9} parent=0 // pred_check_branch
    %29 = sbr.rel (0) target = $region9
  $region8: #{vox_mesh_head_forward.9} parent=0 // pred_region
    _
  $region9: #{vox_mesh_head_forward.9} parent=0 // pred_fallthru
    _
  // Predicated region
  $region10: #{vox_mesh_head_forward.9} parent=0 // pred_check
    _
  $region11: #{vox_mesh_head_forward.9} parent=0 // pred_check_branch
    %31 = sbr.rel (0) target = $region13
  $region12: #{vox_mesh_head_forward.9} parent=0 // pred_region
    _
  $region13: #{vox_mesh_head_forward.9} parent=0 // pred_fallthru
    _
  // Predicated region
  $region14: #{vox_mesh_head_forward.9} parent=0 // pred_check
    _
  $region15: #{vox_mesh_head_forward.9} parent=0 // pred_check_branch
    %33 = sbr.rel (0) target = $region17
  $region16: #{vox_mesh_head_forward.9} parent=0 // pred_region
    _
  $region17: #{vox_mesh_head_forward.9} parent=0 // pred_fallthru
    _
  // Predicated region
  $region18: #{vox_mesh_head_forward.9} parent=0 // pred_check
    _
  $region19: #{vox_mesh_head_forward.9} parent=0 // pred_check_branch
    %35 = sbr.rel (0) target = $region21
  $region20: #{vox_mesh_head_forward.9} parent=0 // pred_region
    _
  $region21: #{vox_mesh_head_forward.9} parent=0 // pred_fallthru
    _
  // Predicated region
  $region22: #{vox_mesh_head_forward.9} parent=0 // pred_check
    _
  $region23: #{vox_mesh_head_forward.9} parent=0 // pred_check_branch
    %37 = sbr.rel (0) target = $region25
  $region24: #{vox_mesh_head_forward.9} parent=0 // pred_region
    _
  $region25: #{vox_mesh_head_forward.9} parent=0 // pred_fallthru
    _
  // Predicated region
  $region26: #{vox_mesh_head_forward.9} parent=0 // pred_check
    _
  $region27: #{vox_mesh_head_forward.9} parent=0 // pred_check_branch
    %39 = sbr.rel (0) target = $region29
  $region28: #{vox_mesh_head_forward.9} parent=0 // pred_region
    _
  $region29: #{vox_mesh_head_forward.9} parent=0 // pred_fallthru
    _
  // Predicated region
  $region30: #{vox_mesh_head_forward.9} parent=0 // pred_check
    _
  $region31: #{vox_mesh_head_forward.9} parent=0 // pred_check_branch
    %41 = sbr.rel (0) target = $region33
  $region32: #{vox_mesh_head_forward.9} parent=0 // pred_region
    _
  $region33: #{vox_mesh_head_forward.9} parent=0 // pred_fallthru
    _
  // Predicated region
  $region34: #{vox_mesh_head_forward.9} parent=0 // pred_check
    _
  $region35: #{vox_mesh_head_forward.9} parent=0 // pred_check_branch
    %43 = sbr.rel (0) target = $region37
  $region36: #{vox_mesh_head_forward.9} parent=0 // pred_region
    _
  $region37: #{vox_mesh_head_forward.9} parent=0 // pred_fallthru
    _
  // Predicated region
  $region38: #{vox_mesh_head_forward.9} parent=0 // pred_check
    _
  $region39: #{vox_mesh_head_forward.9} parent=0 // pred_check_branch
    %45 = sbr.rel (0) target = $region41
  $region40: #{vox_mesh_head_forward.9} parent=0 // pred_region
    _
  $region41: #{vox_mesh_head_forward.9} parent=0 // pred_fallthru
    _
  // Predicated region
  $region42: #{vox_mesh_head_forward.9} parent=0 // pred_check
    _
  $region43: #{vox_mesh_head_forward.9} parent=0 // pred_check_branch
    %47 = sbr.rel (0) target = $region45
  $region44: #{vox_mesh_head_forward.9} parent=0 // pred_region
    _
  $region45: #{vox_mesh_head_forward.9} parent=0 // pred_fallthru
    _
  // Predicated region
  $region46: #{vox_mesh_head_forward.9} parent=0 // pred_check
    _
  $region47: #{vox_mesh_head_forward.9} parent=0 // pred_check_branch
    %49 = sbr.rel (0) target = $region49
  $region48: #{vox_mesh_head_forward.9} parent=0 // pred_region
    _
  $region49: #{vox_mesh_head_forward.9} parent=0 // pred_fallthru
    _
  // Predicated region
  $region50: #{vox_mesh_head_forward.9} parent=0 // pred_check
    _
  $region51: #{vox_mesh_head_forward.9} parent=0 // pred_check_branch
    %51 = sbr.rel (0) target = $region53
  $region52: #{vox_mesh_head_forward.9} parent=0 // pred_region
    _
  $region53: #{vox_mesh_head_forward.9} parent=0 // pred_fallthru
    _
  // Predicated region
  $region54: #{vox_mesh_head_forward.9} parent=0 // pred_check
    _
  $region55: #{vox_mesh_head_forward.9} parent=0 // pred_check_branch
    %53 = sbr.rel (0) target = $region57
  $region56: #{vox_mesh_head_forward.9} parent=0 // pred_region
    _
  $region57: #{vox_mesh_head_forward.9} parent=0 // pred_fallthru
    _
  // Predicated region
  $region58: #{vox_mesh_head_forward.9} parent=0 // pred_check
    _
  $region59: #{vox_mesh_head_forward.9} parent=0 // pred_check_branch
    %55 = sbr.rel (0) target = $region61
  $region60: #{vox_mesh_head_forward.9} parent=0 // pred_region
    _
  $region61: #{vox_mesh_head_forward.9} parent=0 // pred_fallthru
    _
  // Predicated region
  $region62: #{vox_mesh_head_forward.9} parent=0 // pred_check
    _
  $region63: #{vox_mesh_head_forward.9} parent=0 // pred_check_branch
    %57 = sbr.rel (0) target = $region65
  $region64: #{vox_mesh_head_forward.9} parent=0 // pred_region
    _
  $region65: #{vox_mesh_head_forward.9} parent=0 // pred_fallthru
    _
  // Predicated region
  $region66: #{vox_mesh_head_forward.9} parent=0 // pred_check
    _
  $region67: #{vox_mesh_head_forward.9} parent=0 // pred_check_branch
    %59 = sbr.rel (0) target = $region69
  $region68: #{vox_mesh_head_forward.9} parent=0 // pred_region
    _
  $region69: #{vox_mesh_head_forward.9} parent=0 // pred_fallthru
    _
  // Predicated region
  $region70: #{vox_mesh_head_forward.9} parent=0 // pred_check
    _
  $region71: #{vox_mesh_head_forward.9} parent=0 // pred_check_branch
    %61 = sbr.rel (0) target = $region73
  $region72: #{vox_mesh_head_forward.9} parent=0 // pred_region
    _
  $region73: #{vox_mesh_head_forward.9} parent=0 // pred_fallthru
    _
  // Predicated region
  $region74: #{vox_mesh_head_forward.9} parent=0 // pred_check
    _
  $region75: #{vox_mesh_head_forward.9} parent=0 // pred_check_branch
    %63 = sbr.rel (0) target = $region77
  $region76: #{vox_mesh_head_forward.9} parent=0 // pred_region
    _
  $region77: #{vox_mesh_head_forward.9} parent=0 // pred_fallthru
    _
  // Predicated region
  $region78: #{vox_mesh_head_forward.9} parent=0 // pred_check
    _
  $region79: #{vox_mesh_head_forward.9} parent=0 // pred_check_branch
    %65 = sbr.rel (0) target = $region81
  $region80: #{vox_mesh_head_forward.9} parent=0 // pred_region
    _
  $region81: #{vox_mesh_head_forward.9} parent=0 // pred_fallthru
    _
  // Predicated region
  $region82: #{vox_mesh_head_forward.9} parent=0 // pred_check
    _
  $region83: #{vox_mesh_head_forward.9} parent=0 // pred_check_branch
    %67 = sbr.rel (0) target = $region85
  $region84: #{vox_mesh_head_forward.9} parent=0 // pred_region
    _
  $region85: #{vox_mesh_head_forward.9} parent=0 // pred_fallthru
    _
  %v69 = vld [vmem:[%s1] sm:$0xf]
  %v70 = vld [vmem:[%s1 + $0x4] sm:$0xf]
  %v71 = vld [vmem:[%s2] sm:$0xf]
  %v72 = vld [vmem:[%s2 + $0x4] sm:$0xf]
  %v73 = vld [vmem:[%s3] sm:$0xff]
  %v74 = vld [vmem:[%s3 + $0x8] sm:$0xff]
  %v77 = vunpack.c.l.b16 %v71
  %v78 = vunpack.c.l.b16 %v72
  %v79 = vpack.c.b16 %v78, %v77
  %v82 = vunpack.c.l.b16 %v69
  %v83 = vunpack.c.l.b16 %v70
  %v84 = vpack.c.b16 %v83, %v82
  %vm86 = vcmask 130048
  %v88 = vsel %vm86, %v79, 0
  %90 = vmatprep.subr.bf16.mxu0 0
  %91 = vmatpush1.bf16.msra.mxu0 %v84
  %92 = vmatprep.subr.bf16.mxu0 0
  %93 = vmatpush1.bf16.msra.mxu0 0
  %94 = vmatprep.subr.bf16.mxu0 0
  %95 = vmatpush1.bf16.msra.mxu0 0
  %96 = vmatprep.subr.bf16.mxu0 0
  %97 = vmatpush1.bf16.msra.mxu0 0
  %98 = vmatprep.subr.bf16.mxu0 0
  %99 = vmatpush1.bf16.msra.mxu0 0
  %100 = vmatprep.subr.bf16.mxu0 0
  %101 = vmatpush1.bf16.msra.mxu0 0
  %102 = vmatprep.subr.bf16.mxu0 0
  %103 = vmatpush1.bf16.msra.mxu0 0
  %104 = vmatprep.subr.bf16.mxu0 0
  %105 = vmatpush1.bf16.msra.mxu0 0
  %106 = vmatprep.subr.bf16.mxu0 0
  %107 = vmatpush1.bf16.msra.mxu0 0
  %108 = vmatprep.subr.bf16.mxu0 0
  %109 = vmatpush1.bf16.msra.mxu0 0
  %110 = vmatprep.subr.bf16.mxu0 0
  %111 = vmatpush1.bf16.msra.mxu0 0
  %112 = vmatprep.subr.bf16.mxu0 0
  %113 = vmatpush1.bf16.msra.mxu0 0
  %114 = vmatprep.subr.bf16.mxu0 0
  %115 = vmatpush1.bf16.msra.mxu0 0
  %116 = vmatprep.subr.bf16.mxu0 0
  %117 = vmatpush1.bf16.msra.mxu0 0
  %118 = vmatprep.subr.bf16.mxu0 0
  %119 = vmatpush1.bf16.msra.mxu0 0
  %120 = vmatprep.subr.bf16.mxu0 0
  %121 = vmatpush1.bf16.msra.mxu0 0
  %122 = vmatprep.mubr.bf16.mxu0 0
  %123 = vmatmul.mubr.bf16.gmra.mrb[0].mxu0 %v88
  %v124 = vpop.f32.mrb[0].mxu0
  %v125 = vadd.f32 0.0, %v124
  %v126 = vpop.f32.mrb[0].mxu0
  %v127 = vpop.f32.mrb[0].mxu0
  %v128 = vadd.f32 0.0, %v127
  %v129 = vpop.f32.mrb[0].mxu0
  %130 = vdwg.mxu0
  %v131 = vpack.c.bf16 %v128, %v125
  %v132 = vld [vmem:[%s0] sm:$0xf]
  %v133 = vld [vmem:[%s0 + $0x4] sm:$0xf]
  %v134 = vld [vmem:[%s4] sm:$0xf]
  %v135 = vld [vmem:[%s4 + $0x4] sm:$0xf]
  %v136 = vld [vmem:[%s4 + $0x8] sm:$0xf]
  %v137 = vld [vmem:[%s4 + $0xc] sm:$0xf]
  %v138 = vld [vmem:[%s4 + $0x10] sm:$0xf]
  %v139 = vld [vmem:[%s4 + $0x14] sm:$0xf]
  %v140 = vld [vmem:[%s4 + $0x18] sm:$0xf]
  %v141 = vld [vmem:[%s4 + $0x1c] sm:$0xf]
  %v142 = vld [vmem:[%s5] sm:$0x1]
  %v144 = vlaneseq
  %v145 = vshrl.u32 %v144, 7
  %v146 = vsub.s32 0, %v145
  %v147 = vrot.slane %v142, %v146
  %v151 = vunpack.c.l.b16 %v132
  %v152 = vunpack.c.l.b16 %v133
  %v153 = vpack.c.b16 %v152, %v151
  %v162 = vunpack.c.l.b16 %v134
  %v163 = vunpack.c.l.b16 %v135
  %v164 = vunpack.c.l.b16 %v136
  %v165 = vunpack.c.l.b16 %v137
  %v166 = vunpack.c.l.b16 %v138
  %v167 = vunpack.c.l.b16 %v139
  %v168 = vunpack.c.l.b16 %v140
  %v169 = vunpack.c.l.b16 %v141
  %v170 = vpack.c.b16 %v163, %v162
  %v171 = vpack.c.b16 %v165, %v164
  %v172 = vpack.c.b16 %v167, %v166
  %v173 = vpack.c.b16 %v169, %v168
  %vm178 = vcmask 523264
  %v180 = vsel %vm178, %v153, 0
  %182 = vmatprep.subr.bf16.mxu0 0
  %183 = vmatpush1.bf16.msra.mxu0 %v170
  %184 = vmatprep.subr.bf16.mxu0 0
  %185 = vmatpush1.bf16.msra.mxu0 %v171
  %186 = vmatprep.subr.bf16.mxu0 0
  %187 = vmatpush1.bf16.msra.mxu0 %v172
  %188 = vmatprep.subr.bf16.mxu0 0
  %189 = vmatpush1.bf16.msra.mxu0 %v173
  %190 = vmatprep.subr.bf16.mxu0 0
  %191 = vmatpush1.bf16.msra.mxu0 0
  %192 = vmatprep.subr.bf16.mxu0 0
  %193 = vmatpush1.bf16.msra.mxu0 0
  %194 = vmatprep.subr.bf16.mxu0 0
  %195 = vmatpush1.bf16.msra.mxu0 0
  %196 = vmatprep.subr.bf16.mxu0 0
  %197 = vmatpush1.bf16.msra.mxu0 0
  %198 = vmatprep.subr.bf16.mxu0 0
  %199 = vmatpush1.bf16.msra.mxu0 0
  %200 = vmatprep.subr.bf16.mxu0 0
  %201 = vmatpush1.bf16.msra.mxu0 0
  %202 = vmatprep.subr.bf16.mxu0 0
  %203 = vmatpush1.bf16.msra.mxu0 0
  %204 = vmatprep.subr.bf16.mxu0 0
  %205 = vmatpush1.bf16.msra.mxu0 0
  %206 = vmatprep.subr.bf16.mxu0 0
  %207 = vmatpush1.bf16.msra.mxu0 0
  %208 = vmatprep.subr.bf16.mxu0 0
  %209 = vmatpush1.bf16.msra.mxu0 0
  %210 = vmatprep.subr.bf16.mxu0 0
  %211 = vmatpush1.bf16.msra.mxu0 0
  %212 = vmatprep.subr.bf16.mxu0 0
  %213 = vmatpush1.bf16.msra.mxu0 0
  %214 = vmatprep.mubr.bf16.mxu0 0
  %215 = vmatmul.mubr.bf16.gmra.mrb[0].mxu0 %v180
  %v216 = vpop.f32.mrb[0].mxu0
  %v217 = vadd.f32 %v147, %v216
  %v218 = vpop.f32.mrb[0].mxu0
  %v219 = vpop.f32.mrb[0].mxu0
  %v220 = vadd.f32 %v147, %v219
  %v221 = vpop.f32.mrb[0].mxu0
  %222 = vdwg.mxu0
  %v223 = vmax.f32 %v217, 0.0
  %v224 = vmax.f32 %v220, 0.0
  %v225 = vpack.c.bf16 %v224, %v223
  %226 = vmatprep.subr.bf16.mxu0 0
  %227 = vmatpush1.bf16.msra.mxu0 %v225
  %228 = vmatprep.subr.bf16.mxu0 0
  %229 = vmatpush1.bf16.msra.mxu0 0
  %230 = vmatprep.subr.bf16.mxu0 0
  %231 = vmatpush1.bf16.msra.mxu0 0
  %232 = vmatprep.subr.bf16.mxu0 0
  %233 = vmatpush1.bf16.msra.mxu0 0
  %234 = vmatprep.subr.bf16.mxu0 0
  %235 = vmatpush1.bf16.msra.mxu0 0
  %236 = vmatprep.subr.bf16.mxu0 0
  %237 = vmatpush1.bf16.msra.mxu0 0
  %238 = vmatprep.subr.bf16.mxu0 0
  %239 = vmatpush1.bf16.msra.mxu0 0
  %240 = vmatprep.subr.bf16.mxu0 0
  %241 = vmatpush1.bf16.msra.mxu0 0
  %242 = vmatprep.subr.bf16.mxu0 0
  %243 = vmatpush1.bf16.msra.mxu0 0
  %244 = vmatprep.subr.bf16.mxu0 0
  %245 = vmatpush1.bf16.msra.mxu0 0
  %246 = vmatprep.subr.bf16.mxu0 0
  %247 = vmatpush1.bf16.msra.mxu0 0
  %248 = vmatprep.subr.bf16.mxu0 0
  %249 = vmatpush1.bf16.msra.mxu0 0
  %250 = vmatprep.subr.bf16.mxu0 0
  %251 = vmatpush1.bf16.msra.mxu0 0
  %252 = vmatprep.subr.bf16.mxu0 0
  %253 = vmatpush1.bf16.msra.mxu0 0
  %254 = vmatprep.subr.bf16.mxu0 0
  %255 = vmatpush1.bf16.msra.mxu0 0
  %256 = vmatprep.subr.bf16.mxu0 0
  %257 = vmatpush1.bf16.msra.mxu0 0
  %258 = vmatprep.mubr.bf16.mxu0 0
  %259 = vmatmul.mubr.bf16.gmra.mrb[0].mxu0 %v88
  %v260 = vpop.f32.mrb[0].mxu0
  %v261 = vadd.f32 0.0, %v260
  %v262 = vpop.f32.mrb[0].mxu0
  %v263 = vpop.f32.mrb[0].mxu0
  %v264 = vadd.f32 0.0, %v263
  %v265 = vpop.f32.mrb[0].mxu0
  %266 = vdwg.mxu0
  %v267 = vpack.c.bf16 %v264, %v261
  %v268 = vld [vmem:[%s6] sm:$0xf]
  %v269 = vld [vmem:[%s6 + $0x4] sm:$0xf]
  %v270 = vld [vmem:[%s6 + $0x8] sm:$0xf]
  %v271 = vld [vmem:[%s6 + $0xc] sm:$0xf]
  %v272 = vld [vmem:[%s7] sm:$0xf]
  %vm273 = vcmask 64512
  %v275 = vsel %vm273, %v84, 0
  %vm277 = vcmask 1043456
  %v279 = vsel %vm277, %v272, 0
  %281 = vmatprep.subr.bf16.mxu0 0
  %282 = vmatpush1.bf16.msra.mxu0 %v279
  %283 = vmatprep.subr.bf16.mxu0 0
  %284 = vmatpush1.bf16.msra.mxu0 0
  %285 = vmatprep.subr.bf16.mxu0 0
  %286 = vmatpush1.bf16.msra.mxu0 0
  %287 = vmatprep.subr.bf16.mxu0 0
  %288 = vmatpush1.bf16.msra.mxu0 0
  %289 = vmatprep.subr.bf16.mxu0 0
  %290 = vmatpush1.bf16.msra.mxu0 0
  %291 = vmatprep.subr.bf16.mxu0 0
  %292 = vmatpush1.bf16.msra.mxu0 0
  %293 = vmatprep.subr.bf16.mxu0 0
  %294 = vmatpush1.bf16.msra.mxu0 0
  %295 = vmatprep.subr.bf16.mxu0 0
  %296 = vmatpush1.bf16.msra.mxu0 0
  %297 = vmatprep.subr.bf16.mxu0 0
  %298 = vmatpush1.bf16.msra.mxu0 0
  %299 = vmatprep.subr.bf16.mxu0 0
  %300 = vmatpush1.bf16.msra.mxu0 0
  %301 = vmatprep.subr.bf16.mxu0 0
  %302 = vmatpush1.bf16.msra.mxu0 0
  %303 = vmatprep.subr.bf16.mxu0 0
  %304 = vmatpush1.bf16.msra.mxu0 0
  %305 = vmatprep.subr.bf16.mxu0 0
  %306 = vmatpush1.bf16.msra.mxu0 0
  %307 = vmatprep.subr.bf16.mxu0 0
  %308 = vmatpush1.bf16.msra.mxu0 0
  %309 = vmatprep.subr.bf16.mxu0 0
  %310 = vmatpush1.bf16.msra.mxu0 0
  %311 = vmatprep.subr.bf16.mxu0 0
  %312 = vmatpush1.bf16.msra.mxu0 0
  %313 = vmatprep.mubr.bf16.mxu0 0
  %314 = vmatmul.mubr.bf16.gmra.mrb[0].mxu0 %v275
  %v315 = vpop.f32.mrb[0].mxu0
  %v316 = vadd.f32 0.0, %v315
  %v317 = vpop.f32.mrb[0].mxu0
  %v318 = vpop.f32.mrb[0].mxu0
  %v319 = vadd.f32 0.0, %v318
  %v320 = vpop.f32.mrb[0].mxu0
  %321 = vdwg.mxu0
  %v326 = vunpack.c.l.b16 %v268
  %v327 = vunpack.c.l.b16 %v269
  %v328 = vunpack.c.l.b16 %v270
  %v329 = vunpack.c.l.b16 %v271
  %v330 = vpack.c.b16 %v327, %v326
  %v331 = vpack.c.b16 %v329, %v328
  %vm334 = vcmask 261120
  %v336 = vsel %vm334, %v225, 0
  %338 = vmatprep.subr.bf16.mxu0 0
  %339 = vmatpush1.bf16.msra.mxu0 %v330
  %340 = vmatprep.subr.bf16.mxu0 0
  %341 = vmatpush1.bf16.msra.mxu0 %v331
  %342 = vmatprep.subr.bf16.mxu0 0
  %343 = vmatpush1.bf16.msra.mxu0 0
  %344 = vmatprep.subr.bf16.mxu0 0
  %345 = vmatpush1.bf16.msra.mxu0 0
  %346 = vmatprep.subr.bf16.mxu0 0
  %347 = vmatpush1.bf16.msra.mxu0 0
  %348 = vmatprep.subr.bf16.mxu0 0
  %349 = vmatpush1.bf16.msra.mxu0 0
  %350 = vmatprep.subr.bf16.mxu0 0
  %351 = vmatpush1.bf16.msra.mxu0 0
  %352 = vmatprep.subr.bf16.mxu0 0
  %353 = vmatpush1.bf16.msra.mxu0 0
  %354 = vmatprep.subr.bf16.mxu0 0
  %355 = vmatpush1.bf16.msra.mxu0 0
  %356 = vmatprep.subr.bf16.mxu0 0
  %357 = vmatpush1.bf16.msra.mxu0 0
  %358 = vmatprep.subr.bf16.mxu0 0
  %359 = vmatpush1.bf16.msra.mxu0 0
  %360 = vmatprep.subr.bf16.mxu0 0
  %361 = vmatpush1.bf16.msra.mxu0 0
  %362 = vmatprep.subr.bf16.mxu0 0
  %363 = vmatpush1.bf16.msra.mxu0 0
  %364 = vmatprep.subr.bf16.mxu0 0
  %365 = vmatpush1.bf16.msra.mxu0 0
  %366 = vmatprep.subr.bf16.mxu0 0
  %367 = vmatpush1.bf16.msra.mxu0 0
  %368 = vmatprep.subr.bf16.mxu0 0
  %369 = vmatpush1.bf16.msra.mxu0 0
  %370 = vmatprep.mubr.bf16.mxu0 0
  %371 = vmatmul.mubr.bf16.gmra.mrb[0].mxu0 %v336
  %v372 = vpop.f32.mrb[0].mxu0
  %v373 = vadd.f32 %v316, %v372
  %v374 = vpop.f32.mrb[0].mxu0
  %v375 = vpop.f32.mrb[0].mxu0
  %v376 = vadd.f32 %v319, %v375
  %v377 = vpop.f32.mrb[0].mxu0
  %378 = vdwg.mxu0
  %v379 = vld [vmem:[%s8] sm:$0x1]
  %v381 = vlaneseq
  %v382 = vshrl.u32 %v381, 7
  %v383 = vsub.s32 0, %v382
  %v384 = vrot.slane %v379, %v383
  %v386 = vadd.f32 %v373, %v384
  %v387 = vadd.f32 %v376, %v384
  %v388 = vld [vmem:[%s9] sm:$0xf]
  %v389 = vld [vmem:[%s9 + $0x4] sm:$0xf]
  %v390 = vld [vmem:[%s9 + $0x8] sm:$0xf]
  %v391 = vld [vmem:[%s9 + $0xc] sm:$0xf]
  %v396 = vunpack.c.l.b16 %v388
  %v397 = vunpack.c.l.b16 %v389
  %v398 = vunpack.c.l.b16 %v390
  %v399 = vunpack.c.l.b16 %v391
  %v400 = vpack.c.b16 %v397, %v396
  %v401 = vpack.c.b16 %v399, %v398
  %v405 = vsel %vm334, %v267, 0
  %407 = vmatprep.subr.bf16.mxu0 0
  %408 = vmatpush1.bf16.msra.mxu0 %v400
  %409 = vmatprep.subr.bf16.mxu0 0
  %410 = vmatpush1.bf16.msra.mxu0 %v401
  %411 = vmatprep.subr.bf16.mxu0 0
  %412 = vmatpush1.bf16.msra.mxu0 0
  %413 = vmatprep.subr.bf16.mxu0 0
  %414 = vmatpush1.bf16.msra.mxu0 0
  %415 = vmatprep.subr.bf16.mxu0 0
  %416 = vmatpush1.bf16.msra.mxu0 0
  %417 = vmatprep.subr.bf16.mxu0 0
  %418 = vmatpush1.bf16.msra.mxu0 0
  %419 = vmatprep.subr.bf16.mxu0 0
  %420 = vmatpush1.bf16.msra.mxu0 0
  %421 = vmatprep.subr.bf16.mxu0 0
  %422 = vmatpush1.bf16.msra.mxu0 0
  %423 = vmatprep.subr.bf16.mxu0 0
  %424 = vmatpush1.bf16.msra.mxu0 0
  %425 = vmatprep.subr.bf16.mxu0 0
  %426 = vmatpush1.bf16.msra.mxu0 0
  %427 = vmatprep.subr.bf16.mxu0 0
  %428 = vmatpush1.bf16.msra.mxu0 0
  %429 = vmatprep.subr.bf16.mxu0 0
  %430 = vmatpush1.bf16.msra.mxu0 0
  %431 = vmatprep.subr.bf16.mxu0 0
  %432 = vmatpush1.bf16.msra.mxu0 0
  %433 = vmatprep.subr.bf16.mxu0 0
  %434 = vmatpush1.bf16.msra.mxu0 0
  %435 = vmatprep.subr.bf16.mxu0 0
  %436 = vmatpush1.bf16.msra.mxu0 0
  %437 = vmatprep.subr.bf16.mxu0 0
  %438 = vmatpush1.bf16.msra.mxu0 0
  %439 = vmatprep.mubr.bf16.mxu0 0
  %440 = vmatmul.mubr.bf16.gmra.mrb[0].mxu0 %v405
  %v441 = vpop.f32.mrb[0].mxu0
  %v442 = vadd.f32 0.0, %v441
  %v443 = vpop.f32.mrb[0].mxu0
  %v444 = vpop.f32.mrb[0].mxu0
  %v445 = vadd.f32 0.0, %v444
  %v446 = vpop.f32.mrb[0].mxu0
  %447 = vdwg.mxu0
  %v448 = vadd.f32 %v386, %v442
  %v449 = vadd.f32 %v387, %v445
  %v450 = vld [vmem:[%s10] sm:$0xf]
  %v452 = vsel %vm273, %v131, 0
  %v455 = vsel %vm277, %v450, 0
  %457 = vmatprep.subr.bf16.mxu0 0
  %458 = vmatpush1.bf16.msra.mxu0 %v455
  %459 = vmatprep.subr.bf16.mxu0 0
  %460 = vmatpush1.bf16.msra.mxu0 0
  %461 = vmatprep.subr.bf16.mxu0 0
  %462 = vmatpush1.bf16.msra.mxu0 0
  %463 = vmatprep.subr.bf16.mxu0 0
  %464 = vmatpush1.bf16.msra.mxu0 0
  %465 = vmatprep.subr.bf16.mxu0 0
  %466 = vmatpush1.bf16.msra.mxu0 0
  %467 = vmatprep.subr.bf16.mxu0 0
  %468 = vmatpush1.bf16.msra.mxu0 0
  %469 = vmatprep.subr.bf16.mxu0 0
  %470 = vmatpush1.bf16.msra.mxu0 0
  %471 = vmatprep.subr.bf16.mxu0 0
  %472 = vmatpush1.bf16.msra.mxu0 0
  %473 = vmatprep.subr.bf16.mxu0 0
  %474 = vmatpush1.bf16.msra.mxu0 0
  %475 = vmatprep.subr.bf16.mxu0 0
  %476 = vmatpush1.bf16.msra.mxu0 0
  %477 = vmatprep.subr.bf16.mxu0 0
  %478 = vmatpush1.bf16.msra.mxu0 0
  %479 = vmatprep.subr.bf16.mxu0 0
  %480 = vmatpush1.bf16.msra.mxu0 0
  %481 = vmatprep.subr.bf16.mxu0 0
  %482 = vmatpush1.bf16.msra.mxu0 0
  %483 = vmatprep.subr.bf16.mxu0 0
  %484 = vmatpush1.bf16.msra.mxu0 0
  %485 = vmatprep.subr.bf16.mxu0 0
  %486 = vmatpush1.bf16.msra.mxu0 0
  %487 = vmatprep.subr.bf16.mxu0 0
  %488 = vmatpush1.bf16.msra.mxu0 0
  %489 = vmatprep.mubr.bf16.mxu0 0
  %490 = vmatmul.mubr.bf16.gmra.mrb[0].mxu0 %v452
  %v491 = vpop.f32.mrb[0].mxu0
  %v492 = vadd.f32 0.0, %v491
  %v493 = vpop.f32.mrb[0].mxu0
  %v494 = vpop.f32.mrb[0].mxu0
  %v495 = vadd.f32 0.0, %v494
  %v496 = vpop.f32.mrb[0].mxu0
  %497 = vdwg.mxu0
  %v498 = vadd.f32 %v448, %v492
  %v499 = vadd.f32 %v449, %v495
  %v500 = vld [vmem:[%s11] sm:$0x1]
  %502 = vset.pattern.permute.xlu0 0
  %503 = vperm.xlu0 %502, %v73
  %v504 = vpop.permute.xlu0 %503
  %507 = vset.pattern.permute.xlu0 0
  %508 = vperm.xlu0 %507, %v74
  %v509 = vpop.permute.xlu0 %508
  %v512 = vlaneseq
  %v513 = vshrl.u32 %v512, 7
  %v514 = vsub.s32 0, %v513
  %v515 = vrot.slane %v500, %v514
  %v517 = vmul.f32 %v504, %v515
  %v518 = vmul.f32 %v509, %v515
  %v519 = vadd.f32 %v498, %v517
  %v520 = vadd.f32 %v499, %v518
  %v521 = vmax.f32 %v519, 0.0
  %v522 = vmax.f32 %v520, 0.0
  %v523 = vpack.c.bf16 %v522, %v521
  %524 = vmatprep.subr.bf16.mxu0 0
  %525 = vmatpush1.bf16.msra.mxu0 %v523
  %526 = vmatprep.subr.bf16.mxu0 0
  %527 = vmatpush1.bf16.msra.mxu0 0
  %528 = vmatprep.subr.bf16.mxu0 0
  %529 = vmatpush1.bf16.msra.mxu0 0
  %530 = vmatprep.subr.bf16.mxu0 0
  %531 = vmatpush1.bf16.msra.mxu0 0
  %532 = vmatprep.subr.bf16.mxu0 0
  %533 = vmatpush1.bf16.msra.mxu0 0
  %534 = vmatprep.subr.bf16.mxu0 0
  %535 = vmatpush1.bf16.msra.mxu0 0
  %536 = vmatprep.subr.bf16.mxu0 0
  %537 = vmatpush1.bf16.msra.mxu0 0
  %538 = vmatprep.subr.bf16.mxu0 0
  %539 = vmatpush1.bf16.msra.mxu0 0
  %540 = vmatprep.subr.bf16.mxu0 0
  %541 = vmatpush1.bf16.msra.mxu0 0
  %542 = vmatprep.subr.bf16.mxu0 0
  %543 = vmatpush1.bf16.msra.mxu0 0
  %544 = vmatprep.subr.bf16.mxu0 0
  %545 = vmatpush1.bf16.msra.mxu0 0
  %546 = vmatprep.subr.bf16.mxu0 0
  %547 = vmatpush1.bf16.msra.mxu0 0
  %548 = vmatprep.subr.bf16.mxu0 0
  %549 = vmatpush1.bf16.msra.mxu0 0
  %550 = vmatprep.subr.bf16.mxu0 0
  %551 = vmatpush1.bf16.msra.mxu0 0
  %552 = vmatprep.subr.bf16.mxu0 0
  %553 = vmatpush1.bf16.msra.mxu0 0
  %554 = vmatprep.subr.bf16.mxu0 0
  %555 = vmatpush1.bf16.msra.mxu0 0
  %556 = vmatprep.mubr.bf16.mxu0 0
  %557 = vmatmul.mubr.bf16.gmra.mrb[0].mxu0 %v88
  %v558 = vpop.f32.mrb[0].mxu0
  %v559 = vadd.f32 0.0, %v558
  %v560 = vpop.f32.mrb[0].mxu0
  %v561 = vpop.f32.mrb[0].mxu0
  %v562 = vadd.f32 0.0, %v561
  %v563 = vpop.f32.mrb[0].mxu0
  %564 = vdwg.mxu0
  %v565 = vpack.c.bf16 %v562, %v559
  %v566 = vld [vmem:[%s12] sm:$0xf]
  %v567 = vld [vmem:[%s12 + $0x4] sm:$0xf]
  %v568 = vld [vmem:[%s12 + $0x8] sm:$0xf]
  %v569 = vld [vmem:[%s12 + $0xc] sm:$0xf]
  %v570 = vld [vmem:[%s13] sm:$0xf]
  %v572 = vsel %vm277, %v570, 0
  %574 = vmatprep.subr.bf16.mxu0 0
  %575 = vmatpush1.bf16.msra.mxu0 %v572
  %576 = vmatprep.subr.bf16.mxu0 0
  %577 = vmatpush1.bf16.msra.mxu0 0
  %578 = vmatprep.subr.bf16.mxu0 0
  %579 = vmatpush1.bf16.msra.mxu0 0
  %580 = vmatprep.subr.bf16.mxu0 0
  %581 = vmatpush1.bf16.msra.mxu0 0
  %582 = vmatprep.subr.bf16.mxu0 0
  %583 = vmatpush1.bf16.msra.mxu0 0
  %584 = vmatprep.subr.bf16.mxu0 0
  %585 = vmatpush1.bf16.msra.mxu0 0
  %586 = vmatprep.subr.bf16.mxu0 0
  %587 = vmatpush1.bf16.msra.mxu0 0
  %588 = vmatprep.subr.bf16.mxu0 0
  %589 = vmatpush1.bf16.msra.mxu0 0
  %590 = vmatprep.subr.bf16.mxu0 0
  %591 = vmatpush1.bf16.msra.mxu0 0
  %592 = vmatprep.subr.bf16.mxu0 0
  %593 = vmatpush1.bf16.msra.mxu0 0
  %594 = vmatprep.subr.bf16.mxu0 0
  %595 = vmatpush1.bf16.msra.mxu0 0
  %596 = vmatprep.subr.bf16.mxu0 0
  %597 = vmatpush1.bf16.msra.mxu0 0
  %598 = vmatprep.subr.bf16.mxu0 0
  %599 = vmatpush1.bf16.msra.mxu0 0
  %600 = vmatprep.subr.bf16.mxu0 0
  %601 = vmatpush1.bf16.msra.mxu0 0
  %602 = vmatprep.subr.bf16.mxu0 0
  %603 = vmatpush1.bf16.msra.mxu0 0
  %604 = vmatprep.subr.bf16.mxu0 0
  %605 = vmatpush1.bf16.msra.mxu0 0
  %606 = vmatprep.mubr.bf16.mxu0 0
  %607 = vmatmul.mubr.bf16.gmra.mrb[0].mxu0 %v275
  %v608 = vpop.f32.mrb[0].mxu0
  %v609 = vadd.f32 0.0, %v608
  %v610 = vpop.f32.mrb[0].mxu0
  %v611 = vpop.f32.mrb[0].mxu0
  %v612 = vadd.f32 0.0, %v611
  %v613 = vpop.f32.mrb[0].mxu0
  %614 = vdwg.mxu0
  %v619 = vunpack.c.l.b16 %v566
  %v620 = vunpack.c.l.b16 %v567
  %v621 = vunpack.c.l.b16 %v568
  %v622 = vunpack.c.l.b16 %v569
  %v623 = vpack.c.b16 %v620, %v619
  %v624 = vpack.c.b16 %v622, %v621
  %v628 = vsel %vm334, %v523, 0
  %630 = vmatprep.subr.bf16.mxu0 0
  %631 = vmatpush1.bf16.msra.mxu0 %v623
  %632 = vmatprep.subr.bf16.mxu0 0
  %633 = vmatpush1.bf16.msra.mxu0 %v624
  %634 = vmatprep.subr.bf16.mxu0 0
  %635 = vmatpush1.bf16.msra.mxu0 0
  %636 = vmatprep.subr.bf16.mxu0 0
  %637 = vmatpush1.bf16.msra.mxu0 0
  %638 = vmatprep.subr.bf16.mxu0 0
  %639 = vmatpush1.bf16.msra.mxu0 0
  %640 = vmatprep.subr.bf16.mxu0 0
  %641 = vmatpush1.bf16.msra.mxu0 0
  %642 = vmatprep.subr.bf16.mxu0 0
  %643 = vmatpush1.bf16.msra.mxu0 0
  %644 = vmatprep.subr.bf16.mxu0 0
  %645 = vmatpush1.bf16.msra.mxu0 0
  %646 = vmatprep.subr.bf16.mxu0 0
  %647 = vmatpush1.bf16.msra.mxu0 0
  %648 = vmatprep.subr.bf16.mxu0 0
  %649 = vmatpush1.bf16.msra.mxu0 0
  %650 = vmatprep.subr.bf16.mxu0 0
  %651 = vmatpush1.bf16.msra.mxu0 0
  %652 = vmatprep.subr.bf16.mxu0 0
  %653 = vmatpush1.bf16.msra.mxu0 0
  %654 = vmatprep.subr.bf16.mxu0 0
  %655 = vmatpush1.bf16.msra.mxu0 0
  %656 = vmatprep.subr.bf16.mxu0 0
  %657 = vmatpush1.bf16.msra.mxu0 0
  %658 = vmatprep.subr.bf16.mxu0 0
  %659 = vmatpush1.bf16.msra.mxu0 0
  %660 = vmatprep.subr.bf16.mxu0 0
  %661 = vmatpush1.bf16.msra.mxu0 0
  %662 = vmatprep.mubr.bf16.mxu0 0
  %663 = vmatmul.mubr.bf16.gmra.mrb[0].mxu0 %v628
  %v664 = vpop.f32.mrb[0].mxu0
  %v665 = vadd.f32 %v609, %v664
  %v666 = vpop.f32.mrb[0].mxu0
  %v667 = vpop.f32.mrb[0].mxu0
  %v668 = vadd.f32 %v612, %v667
  %v669 = vpop.f32.mrb[0].mxu0
  %670 = vdwg.mxu0
  %v671 = vld [vmem:[%s14] sm:$0x1]
  %v673 = vlaneseq
  %v674 = vshrl.u32 %v673, 7
  %v675 = vsub.s32 0, %v674
  %v676 = vrot.slane %v671, %v675
  %v678 = vadd.f32 %v665, %v676
  %v679 = vadd.f32 %v668, %v676
  %v680 = vld [vmem:[%s15] sm:$0xf]
  %v681 = vld [vmem:[%s15 + $0x4] sm:$0xf]
  %v682 = vld [vmem:[%s15 + $0x8] sm:$0xf]
  %v683 = vld [vmem:[%s15 + $0xc] sm:$0xf]
  %v688 = vunpack.c.l.b16 %v680
  %v689 = vunpack.c.l.b16 %v681
  %v690 = vunpack.c.l.b16 %v682
  %v691 = vunpack.c.l.b16 %v683
  %v692 = vpack.c.b16 %v689, %v688
  %v693 = vpack.c.b16 %v691, %v690
  %v697 = vsel %vm334, %v565, 0
  %699 = vmatprep.subr.bf16.mxu0 0
  %700 = vmatpush1.bf16.msra.mxu0 %v692
  %701 = vmatprep.subr.bf16.mxu0 0
  %702 = vmatpush1.bf16.msra.mxu0 %v693
  %703 = vmatprep.subr.bf16.mxu0 0
  %704 = vmatpush1.bf16.msra.mxu0 0
  %705 = vmatprep.subr.bf16.mxu0 0
  %706 = vmatpush1.bf16.msra.mxu0 0
  %707 = vmatprep.subr.bf16.mxu0 0
  %708 = vmatpush1.bf16.msra.mxu0 0
  %709 = vmatprep.subr.bf16.mxu0 0
  %710 = vmatpush1.bf16.msra.mxu0 0
  %711 = vmatprep.subr.bf16.mxu0 0
  %712 = vmatpush1.bf16.msra.mxu0 0
  %713 = vmatprep.subr.bf16.mxu0 0
  %714 = vmatpush1.bf16.msra.mxu0 0
  %715 = vmatprep.subr.bf16.mxu0 0
  %716 = vmatpush1.bf16.msra.mxu0 0
  %717 = vmatprep.subr.bf16.mxu0 0
  %718 = vmatpush1.bf16.msra.mxu0 0
  %719 = vmatprep.subr.bf16.mxu0 0
  %720 = vmatpush1.bf16.msra.mxu0 0
  %721 = vmatprep.subr.bf16.mxu0 0
  %722 = vmatpush1.bf16.msra.mxu0 0
  %723 = vmatprep.subr.bf16.mxu0 0
  %724 = vmatpush1.bf16.msra.mxu0 0
  %725 = vmatprep.subr.bf16.mxu0 0
  %726 = vmatpush1.bf16.msra.mxu0 0
  %727 = vmatprep.subr.bf16.mxu0 0
  %728 = vmatpush1.bf16.msra.mxu0 0
  %729 = vmatprep.subr.bf16.mxu0 0
  %730 = vmatpush1.bf16.msra.mxu0 0
  %731 = vmatprep.mubr.bf16.mxu0 0
  %732 = vmatmul.mubr.bf16.gmra.mrb[0].mxu0 %v697
  %v733 = vpop.f32.mrb[0].mxu0
  %v734 = vadd.f32 0.0, %v733
  %v735 = vpop.f32.mrb[0].mxu0
  %v736 = vpop.f32.mrb[0].mxu0
  %v737 = vadd.f32 0.0, %v736
  %v738 = vpop.f32.mrb[0].mxu0
  %739 = vdwg.mxu0
  %v740 = vadd.f32 %v678, %v734
  %v741 = vadd.f32 %v679, %v737
  %v742 = vld [vmem:[%s16] sm:$0xf]
  %v744 = vsel %vm277, %v742, 0
  %746 = vmatprep.subr.bf16.mxu0 0
  %747 = vmatpush1.bf16.msra.mxu0 %v744
  %748 = vmatprep.subr.bf16.mxu0 0
  %749 = vmatpush1.bf16.msra.mxu0 0
  %750 = vmatprep.subr.bf16.mxu0 0
  %751 = vmatpush1.bf16.msra.mxu0 0
  %752 = vmatprep.subr.bf16.mxu0 0
  %753 = vmatpush1.bf16.msra.mxu0 0
  %754 = vmatprep.subr.bf16.mxu0 0
  %755 = vmatpush1.bf16.msra.mxu0 0
  %756 = vmatprep.subr.bf16.mxu0 0
  %757 = vmatpush1.bf16.msra.mxu0 0
  %758 = vmatprep.subr.bf16.mxu0 0
  %759 = vmatpush1.bf16.msra.mxu0 0
  %760 = vmatprep.subr.bf16.mxu0 0
  %761 = vmatpush1.bf16.msra.mxu0 0
  %762 = vmatprep.subr.bf16.mxu0 0
  %763 = vmatpush1.bf16.msra.mxu0 0
  %764 = vmatprep.subr.bf16.mxu0 0
  %765 = vmatpush1.bf16.msra.mxu0 0
  %766 = vmatprep.subr.bf16.mxu0 0
  %767 = vmatpush1.bf16.msra.mxu0 0
  %768 = vmatprep.subr.bf16.mxu0 0
  %769 = vmatpush1.bf16.msra.mxu0 0
  %770 = vmatprep.subr.bf16.mxu0 0
  %771 = vmatpush1.bf16.msra.mxu0 0
  %772 = vmatprep.subr.bf16.mxu0 0
  %773 = vmatpush1.bf16.msra.mxu0 0
  %774 = vmatprep.subr.bf16.mxu0 0
  %775 = vmatpush1.bf16.msra.mxu0 0
  %776 = vmatprep.subr.bf16.mxu0 0
  %777 = vmatpush1.bf16.msra.mxu0 0
  %778 = vmatprep.mubr.bf16.mxu0 0
  %779 = vmatmul.mubr.bf16.gmra.mrb[0].mxu0 %v452
  %v780 = vpop.f32.mrb[0].mxu0
  %v781 = vadd.f32 0.0, %v780
  %v782 = vpop.f32.mrb[0].mxu0
  %v783 = vpop.f32.mrb[0].mxu0
  %v784 = vadd.f32 0.0, %v783
  %v785 = vpop.f32.mrb[0].mxu0
  %786 = vdwg.mxu0
  %v787 = vadd.f32 %v740, %v781
  %v788 = vadd.f32 %v741, %v784
  %v789 = vld [vmem:[%s17] sm:$0x1]
  %v791 = vlaneseq
  %v792 = vshrl.u32 %v791, 7
  %v793 = vsub.s32 0, %v792
  %v794 = vrot.slane %v789, %v793
  %v796 = vmul.f32 %v504, %v794
  %v797 = vmul.f32 %v509, %v794
  %v798 = vadd.f32 %v787, %v796
  %v799 = vadd.f32 %v788, %v797
  %v800 = vmax.f32 %v798, 0.0
  %v801 = vmax.f32 %v799, 0.0
  %v802 = vpack.c.bf16 %v801, %v800
  %v803 = vld [vmem:[%s18] sm:$0xf]
  %v804 = vld [vmem:[%s18 + $0x4] sm:$0xf]
  %v805 = vld [vmem:[%s18 + $0x8] sm:$0xf]
  %v806 = vld [vmem:[%s18 + $0xc] sm:$0xf]
  %v807 = vld [vmem:[%s19] sm:$0xf]
  %v809 = vsel %vm277, %v807, 0
  %811 = vmatprep.subr.bf16.mxu0 0
  %812 = vmatpush1.bf16.msra.mxu0 %v809
  %813 = vmatprep.subr.bf16.mxu0 0
  %814 = vmatpush1.bf16.msra.mxu0 0
  %815 = vmatprep.subr.bf16.mxu0 0
  %816 = vmatpush1.bf16.msra.mxu0 0
  %817 = vmatprep.subr.bf16.mxu0 0
  %818 = vmatpush1.bf16.msra.mxu0 0
  %819 = vmatprep.subr.bf16.mxu0 0
  %820 = vmatpush1.bf16.msra.mxu0 0
  %821 = vmatprep.subr.bf16.mxu0 0
  %822 = vmatpush1.bf16.msra.mxu0 0
  %823 = vmatprep.subr.bf16.mxu0 0
  %824 = vmatpush1.bf16.msra.mxu0 0
  %825 = vmatprep.subr.bf16.mxu0 0
  %826 = vmatpush1.bf16.msra.mxu0 0
  %827 = vmatprep.subr.bf16.mxu0 0
  %828 = vmatpush1.bf16.msra.mxu0 0
  %829 = vmatprep.subr.bf16.mxu0 0
  %830 = vmatpush1.bf16.msra.mxu0 0
  %831 = vmatprep.subr.bf16.mxu0 0
  %832 = vmatpush1.bf16.msra.mxu0 0
  %833 = vmatprep.subr.bf16.mxu0 0
  %834 = vmatpush1.bf16.msra.mxu0 0
  %835 = vmatprep.subr.bf16.mxu0 0
  %836 = vmatpush1.bf16.msra.mxu0 0
  %837 = vmatprep.subr.bf16.mxu0 0
  %838 = vmatpush1.bf16.msra.mxu0 0
  %839 = vmatprep.subr.bf16.mxu0 0
  %840 = vmatpush1.bf16.msra.mxu0 0
  %841 = vmatprep.subr.bf16.mxu0 0
  %842 = vmatpush1.bf16.msra.mxu0 0
  %843 = vmatprep.mubr.bf16.mxu0 0
  %844 = vmatmul.mubr.bf16.gmra.mrb[0].mxu0 %v275
  %v845 = vpop.f32.mrb[0].mxu0
  %v846 = vadd.f32 0.0, %v845
  %v847 = vpop.f32.mrb[0].mxu0
  %v848 = vpop.f32.mrb[0].mxu0
  %v849 = vadd.f32 0.0, %v848
  %v850 = vpop.f32.mrb[0].mxu0
  %851 = vdwg.mxu0
  %v856 = vunpack.c.l.b16 %v803
  %v857 = vunpack.c.l.b16 %v804
  %v858 = vunpack.c.l.b16 %v805
  %v859 = vunpack.c.l.b16 %v806
  %v860 = vpack.c.b16 %v857, %v856
  %v861 = vpack.c.b16 %v859, %v858
  %v865 = vsel %vm334, %v802, 0
  %867 = vmatprep.subr.bf16.mxu0 0
  %868 = vmatpush1.bf16.msra.mxu0 %v860
  %869 = vmatprep.subr.bf16.mxu0 0
  %870 = vmatpush1.bf16.msra.mxu0 %v861
  %871 = vmatprep.subr.bf16.mxu0 0
  %872 = vmatpush1.bf16.msra.mxu0 0
  %873 = vmatprep.subr.bf16.mxu0 0
  %874 = vmatpush1.bf16.msra.mxu0 0
  %875 = vmatprep.subr.bf16.mxu0 0
  %876 = vmatpush1.bf16.msra.mxu0 0
  %877 = vmatprep.subr.bf16.mxu0 0
  %878 = vmatpush1.bf16.msra.mxu0 0
  %879 = vmatprep.subr.bf16.mxu0 0
  %880 = vmatpush1.bf16.msra.mxu0 0
  %881 = vmatprep.subr.bf16.mxu0 0
  %882 = vmatpush1.bf16.msra.mxu0 0
  %883 = vmatprep.subr.bf16.mxu0 0
  %884 = vmatpush1.bf16.msra.mxu0 0
  %885 = vmatprep.subr.bf16.mxu0 0
  %886 = vmatpush1.bf16.msra.mxu0 0
  %887 = vmatprep.subr.bf16.mxu0 0
  %888 = vmatpush1.bf16.msra.mxu0 0
  %889 = vmatprep.subr.bf16.mxu0 0
  %890 = vmatpush1.bf16.msra.mxu0 0
  %891 = vmatprep.subr.bf16.mxu0 0
  %892 = vmatpush1.bf16.msra.mxu0 0
  %893 = vmatprep.subr.bf16.mxu0 0
  %894 = vmatpush1.bf16.msra.mxu0 0
  %895 = vmatprep.subr.bf16.mxu0 0
  %896 = vmatpush1.bf16.msra.mxu0 0
  %897 = vmatprep.subr.bf16.mxu0 0
  %898 = vmatpush1.bf16.msra.mxu0 0
  %899 = vmatprep.mubr.bf16.mxu0 0
  %900 = vmatmul.mubr.bf16.gmra.mrb[0].mxu0 %v865
  %v901 = vpop.f32.mrb[0].mxu0
  %v902 = vadd.f32 %v846, %v901
  %v903 = vpop.f32.mrb[0].mxu0
  %v904 = vpop.f32.mrb[0].mxu0
  %v905 = vadd.f32 %v849, %v904
  %v906 = vpop.f32.mrb[0].mxu0
  %907 = vdwg.mxu0
  %v908 = vld [vmem:[%s20] sm:$0x1]
  %v910 = vlaneseq
  %v911 = vshrl.u32 %v910, 7
  %v912 = vsub.s32 0, %v911
  %v913 = vrot.slane %v908, %v912
  %v915 = vadd.f32 %v902, %v913
  %v916 = vadd.f32 %v905, %v913
  %v917 = vtanh.pop %v915
  %v918 = vtanh.pop %v916
  %919 = vst [vmem:[%s21] sm:$0xff] %v917
  %920 = vst [vmem:[%s21 + $0x8] sm:$0xff] %v918
  // Predicated region
  $region86: #{vox_mesh_head_forward.9} parent=0 // pred_check
    _
  $region87: #{vox_mesh_head_forward.9} parent=0 // pred_check_branch
    %922 = sbr.rel (0) target = $region89
  $region88: #{vox_mesh_head_forward.9} parent=0 // pred_region
    _
  $region89: #{vox_mesh_head_forward.9} parent=0 // pred_fallthru
    _
  // Predicated region
  $region90: #{vox_mesh_head_forward.9} parent=0 // pred_check
    _
  $region91: #{vox_mesh_head_forward.9} parent=0 // pred_check_branch
    %924 = sbr.rel (0) target = $region93
  $region92: #{vox_mesh_head_forward.9} parent=0 // pred_region
    _
  $region93: #{vox_mesh_head_forward.9} parent=0 // pred_fallthru
    _

</llo_original>
